<compile_context>
chip_gen: v7x
topology: tpu7x:2x2x1
jax: 0.10.0
libtpu: 0.0.40
codegen_flags: <defaults>
</compile_context>

<pallas_src>
import functools

import numpy as np
import jax
import jax.numpy as jnp
from jax.experimental import pallas as pl
from jax.experimental.pallas import tpu as pltpu


def _qkv_rope_kernel(x_ref, wqkv_ref, cos_ref, sin_ref,
                     q_ref, k_ref, v_ref,
                     *, n_head, n_kv_head, head_dim, scale):
    """Fused QKV projection + interleaved rotary embedding for ALL rows.

    Runs once (single grid step); the attention kernel never re-does
    K/V projection or RoPE per query tile.
    """
    D = head_dim
    HD = n_head * D
    GD = n_kv_head * D

    # One fused (rows, block) x (block, (H + 2*Hkv)*D) MXU pass, f32 accum.
    qkv = jnp.dot(x_ref[...], wqkv_ref[...], preferred_element_type=jnp.float32)
    q = qkv[:, :HD]                 # lane-aligned slices (multiples of 128)
    k = qkv[:, HD:HD + GD]
    v = qkv[:, HD + GD:]

    # Interleaved rotary embedding:
    #   out[2i]   = x[2i]*cos - x[2i+1]*sin
    #   out[2i+1] = x[2i+1]*cos + x[2i]*sin
    # Pair swap = two lane rolls + parity select; sign folded into the sin
    # table by the wrapper.  Tables arrive pre-tiled to full (rows, H*D)
    # width, so there is no in-kernel table concat.
    def rope(t, cos_t, sin_t):
        lane = jax.lax.broadcasted_iota(jnp.int32, t.shape, 1)
        swapped = jnp.where(lane % 2 == 0,
                            jnp.roll(t, -1, axis=1),   # x[2i+1] at even lanes
                            jnp.roll(t, 1, axis=1))    # x[2i]   at odd lanes
        return t * cos_t + swapped * sin_t

    cos = cos_ref[...]
    sin = sin_ref[...]
    q_ref[...] = rope(q, cos, sin) * scale             # scale folded into q
    k_ref[...] = rope(k, cos[:, :GD], sin[:, :GD])     # table repeats per head
    v_ref[...] = v


def _attention_kernel(q_ref, k_ref, v_ref, wo_ref, o_ref, *, n_kv_head, repeats):
    """Grouped-KV softmax attention + fused output projection, one query tile.

    q_ref: (G, R, TQ, D) roped + pre-scaled queries (G = kv heads, R = query
           heads per kv head).  k_ref / v_ref: (G, B, D) UN-repeated keys /
           values (repeat_kv is never materialized).
    """
    G = n_kv_head
    R = repeats

    q4 = q_ref[...]            # (G, R, TQ, D) f32
    kg = k_ref[...]            # (G, B, D)     f32
    vg = v_ref[...]            # (G, B, D)     f32

    slabs = [None] * (G * R)
    for r in range(R):                             # static, tiny, unrolled
        qg = q4[:, r]                              # (G, TQ, D)
        s = jnp.einsum('gtd,gbd->gtb', qg, kg,
                       preferred_element_type=jnp.float32)        # (G, TQ, B)
        s = s - jnp.max(s, axis=-1, keepdims=True)
        p = jnp.exp(s)
        p = p * pl.reciprocal(jnp.sum(p, axis=-1, keepdims=True), approx=True)
        og = jnp.einsum('gtb,gbd->gtd', p, vg,
                        preferred_element_type=jnp.float32)       # (G, TQ, D)
        for g in range(G):
            slabs[g * R + r] = og[g]               # head h = g*R + r

    # Fused output projection: one (TQ, H*D) x (H*D, block) matmul.
    attn = jnp.concatenate(slabs, axis=1)                          # (TQ, H*D)
    o_ref[...] = jnp.dot(attn.astype(wo_ref.dtype), wo_ref[...],
                         preferred_element_type=jnp.float32)


def attention_forward(x, wq, wk, wv, wo, freq_cos, freq_sin,
                      n_head, n_kv_head, head_dim, q_tile=256):
    """x:(B, block_size); weights laid out (in_features, out_features);
    freq_cos/freq_sin:(B, head_dim//2)."""
    B, block_size = x.shape
    D = head_dim
    H = n_head
    G = n_kv_head
    R = H // G
    HD, GD = H * D, G * D

    q_tile = min(q_tile, B)
    assert B % q_tile == 0 and q_tile % 8 == 0
    n_q_tiles = B // q_tile

    # Rotary tables pre-tiled to full query width (rows, H*D); sign folded
    # into sin (k uses the first G*D columns of the same tables).
    cos_d = jnp.repeat(freq_cos.astype(jnp.float32), 2, axis=-1)          # (B, D)
    sin_d = jnp.repeat(freq_sin.astype(jnp.float32), 2, axis=-1)          # (B, D)
    sign = jnp.tile(jnp.array([-1.0, 1.0], jnp.float32), D // 2)          # (D,)
    cos_full = jnp.tile(cos_d, (1, H))                                    # (B, H*D)
    sin_full = jnp.tile(sin_d * sign, (1, H))                             # (B, H*D)

    # bf16 MXU operands; accumulation / rotary / softmax math stays f32.
    xb = x.astype(jnp.bfloat16)
    wqkv = jnp.concatenate([wq, wk, wv], axis=1).astype(jnp.bfloat16)     # fused QKV
    wob = wo.astype(jnp.bfloat16)

    # --- Pass 1 (runs once): fused QKV projection + RoPE for all rows. ------
    qkv_kernel = functools.partial(_qkv_rope_kernel, n_head=H, n_kv_head=G,
                                   head_dim=D, scale=D ** -0.5)
    q_rot, k_rot, v_all = pl.pallas_call(
        qkv_kernel,
        out_shape=(jax.ShapeDtypeStruct((B, HD), jnp.float32),
                   jax.ShapeDtypeStruct((B, GD), jnp.float32),
                   jax.ShapeDtypeStruct((B, GD), jnp.float32)),
        grid_spec=pltpu.PrefetchScalarGridSpec(
            num_scalar_prefetch=0,
            grid=(1,),
            in_specs=[
                pl.BlockSpec((B, block_size), lambda i: (0, 0)),          # x
                pl.BlockSpec((block_size, HD + 2 * GD), lambda i: (0, 0)),  # w_qkv
                pl.BlockSpec((B, HD), lambda i: (0, 0)),                  # cos
                pl.BlockSpec((B, HD), lambda i: (0, 0)),                  # sin
            ],
            out_specs=[
                pl.BlockSpec((B, HD), lambda i: (0, 0)),                  # q (roped)
                pl.BlockSpec((B, GD), lambda i: (0, 0)),                  # k (roped)
                pl.BlockSpec((B, GD), lambda i: (0, 0)),                  # v
            ]),
        compiler_params=pltpu.CompilerParams(
            dimension_semantics=("arbitrary",),
            vmem_limit_bytes=16 * 1024 * 1024),
    )(xb, wqkv, cos_full, sin_full)

    # Grouped layouts (layout plumbing only, once, outside the hot kernel):
    #   q: (G, R, B, D) -- query heads grouped by the KV head they attend with
    #   k/v: (G, B, D)  -- un-repeated
    q_grp = q_rot.reshape(B, G, R, D).transpose(1, 2, 0, 3)
    k_grp = k_rot.reshape(B, G, D).transpose(1, 0, 2)
    v_grp = v_all.reshape(B, G, D).transpose(1, 0, 2)

    # --- Pass 2: attention + fused output projection, tiled over query rows. -
    attn_kernel = functools.partial(_attention_kernel, n_kv_head=G, repeats=R)
    return pl.pallas_call(
        attn_kernel,
        out_shape=jax.ShapeDtypeStruct((B, block_size), jnp.float32),
        grid_spec=pltpu.PrefetchScalarGridSpec(
            num_scalar_prefetch=0,
            grid=(n_q_tiles,),
            in_specs=[
                pl.BlockSpec((G, R, q_tile, D), lambda i: (0, 0, i, 0)),  # q tile
                pl.BlockSpec((G, B, D), lambda i: (0, 0, 0)),             # k (all)
                pl.BlockSpec((G, B, D), lambda i: (0, 0, 0)),             # v (all)
                pl.BlockSpec((HD, block_size), lambda i: (0, 0)),         # wo
            ],
            out_specs=pl.BlockSpec((q_tile, block_size), lambda i: (i, 0))),
        compiler_params=pltpu.CompilerParams(
            dimension_semantics=("parallel",),
            vmem_limit_bytes=16 * 1024 * 1024),
    )(q_grp, k_grp, v_grp, wob)


def reference_forward(x, wq, wk, wv, wo, freq_cos, freq_sin,
                      n_head, n_kv_head, head_dim):
    """Pure-JAX (f32) reference reproducing the PyTorch forward (cache=None).
    PyTorch's `output.view(B, H*D)` flattens head-major with NO transpose."""
    B = x.shape[0]
    D = head_dim
    repeats = n_head // n_kv_head
    q = (x @ wq).reshape(B, n_head, D)
    k = (x @ wk).reshape(B, n_kv_head, D)
    v = (x @ wv).reshape(B, n_kv_head, D)

    def rope(t):
        tr = t.reshape(*t.shape[:-1], D // 2, 2)
        re = tr[..., 0] * freq_cos[:, None, :] - tr[..., 1] * freq_sin[:, None, :]
        im = tr[..., 0] * freq_sin[:, None, :] + tr[..., 1] * freq_cos[:, None, :]
        return jnp.stack([re, im], axis=-1).reshape(t.shape)

    q, k = rope(q), rope(k)
    k = jnp.repeat(k, repeats, axis=1)   # repeat_kv (repeat_interleave, dim=1)
    v = jnp.repeat(v, repeats, axis=1)
    s = jnp.einsum('bhd,chd->hbc', q, k) * (D ** -0.5)
    p = jax.nn.softmax(s, axis=-1)
    o = jnp.einsum('hbc,chd->bhd', p, v)          # (B, H, D)
    return o.reshape(B, n_head * D) @ wo          # == output.view(B, H*D) @ Wo^T


if __name__ == "__main__":
    # Small config consistent with the module: x is (B, block_size) where B
    # acts as the "sequence" axis for attention.
    B = 64
    block_size = 128
    n_head = 4
    n_kv_head = 2
    head_dim = 128

    key = jax.random.PRNGKey(0)
    kx, kq, kk, kv, ko = jax.random.split(key, 5)
    x = jax.random.normal(kx, (B, block_size), jnp.float32)
    wq = jax.random.normal(kq, (block_size, n_head * head_dim), jnp.float32) * 0.05
    wk = jax.random.normal(kk, (block_size, n_kv_head * head_dim), jnp.float32) * 0.05
    wv = jax.random.normal(kv, (block_size, n_kv_head * head_dim), jnp.float32) * 0.05
    wo = jax.random.normal(ko, (n_head * head_dim, block_size), jnp.float32) * 0.05

    # freq_cis (complex, shape (B, head_dim//2)) represented as cos/sin.
    pos = jnp.arange(B, dtype=jnp.float32)[:, None]
    inv_freq = 1.0 / (10000.0 ** (jnp.arange(0, head_dim, 2, dtype=jnp.float32)
                                  / head_dim))
    angles = pos * inv_freq[None, :]                                  # (B, D//2)
    freq_cos, freq_sin = jnp.cos(angles), jnp.sin(angles)

    out = attention_forward(x, wq, wk, wv, wo, freq_cos, freq_sin,
                            n_head, n_kv_head, head_dim)
    out = jax.block_until_ready(out)

    ref = reference_forward(x, wq, wk, wv, wo, freq_cos, freq_sin,
                            n_head, n_kv_head, head_dim)
    # bf16 MXU operands + approx reciprocal vs the f32 reference.
    np.testing.assert_allclose(np.asarray(out), np.asarray(ref),
                               rtol=2e-2, atol=2e-2)
    print("KERNEL_OK")
</pallas_src>

<mosaic_0001>
module attributes {stable_mosaic.version = 11 : i64} {
  func.func @_qkv_rope_kernel(%arg0: i32, %arg1: memref<64x128xbf16, #tpu.memory_space<vmem>>, %arg2: memref<128x1024xbf16, #tpu.memory_space<vmem>>, %arg3: memref<64x512xf32, #tpu.memory_space<vmem>>, %arg4: memref<64x512xf32, #tpu.memory_space<vmem>>, %arg5: memref<64x512xf32, #tpu.memory_space<vmem>>, %arg6: memref<64x256xf32, #tpu.memory_space<vmem>>, %arg7: memref<64x256xf32, #tpu.memory_space<vmem>>) attributes {dimension_semantics = [#tpu.dimension_semantics<arbitrary>], iteration_bounds = array<i64: 1>, scalar_prefetch = 0 : i64, scratch_operands = 0 : i64, tpu.core_type = #tpu.core_type<tc>, window_params = [{pipeline_mode = #tpu.pipeline_mode<synchronous>, transform_indices = @transform_0, window_bounds = array<i64: 64, 128>}, {pipeline_mode = #tpu.pipeline_mode<synchronous>, transform_indices = @transform_1, window_bounds = array<i64: 128, 1024>}, {pipeline_mode = #tpu.pipeline_mode<synchronous>, transform_indices = @transform_2, window_bounds = array<i64: 64, 512>}, {pipeline_mode = #tpu.pipeline_mode<synchronous>, transform_indices = @transform_3, window_bounds = array<i64: 64, 512>}, {pipeline_mode = #tpu.pipeline_mode<synchronous>, transform_indices = @transform_4, window_bounds = array<i64: 64, 512>}, {pipeline_mode = #tpu.pipeline_mode<synchronous>, transform_indices = @transform_5, window_bounds = array<i64: 64, 256>}, {pipeline_mode = #tpu.pipeline_mode<synchronous>, transform_indices = @transform_6, window_bounds = array<i64: 64, 256>}]} {
    %c0 = arith.constant 0 : index
    %c0_0 = arith.constant 0 : index
    %0 = vector.load %arg1[%c0, %c0_0] : memref<64x128xbf16, #tpu.memory_space<vmem>>, vector<64x128xbf16>
    %c0_1 = arith.constant 0 : index
    %c0_2 = arith.constant 0 : index
    %1 = vector.load %arg2[%c0_1, %c0_2] : memref<128x1024xbf16, #tpu.memory_space<vmem>>, vector<128x1024xbf16>
    %cst = arith.constant dense<0.000000e+00> : vector<64x1024xf32>
    %2 = tpu.matmul %0, %1, %cst {dimension_numbers = #tpu.dot_dimension_numbers<[1], [0], [0], [1], [0, 0, 1, 1], [], []>} : vector<64x128xbf16>, vector<128x1024xbf16>, vector<64x1024xf32> -> vector<64x1024xf32>
    %3 = vector.extract_strided_slice %2 {offsets = [0, 0], sizes = [64, 512], strides = [1, 1]} : vector<64x1024xf32> to vector<64x512xf32>
    %4 = vector.extract_strided_slice %2 {offsets = [0, 512], sizes = [64, 256], strides = [1, 1]} : vector<64x1024xf32> to vector<64x256xf32>
    %5 = vector.extract_strided_slice %2 {offsets = [0, 768], sizes = [64, 256], strides = [1, 1]} : vector<64x1024xf32> to vector<64x256xf32>
    %c0_3 = arith.constant 0 : index
    %c0_4 = arith.constant 0 : index
    %6 = vector.load %arg3[%c0_3, %c0_4] : memref<64x512xf32, #tpu.memory_space<vmem>>, vector<64x512xf32>
    %c0_5 = arith.constant 0 : index
    %c0_6 = arith.constant 0 : index
    %7 = vector.load %arg4[%c0_5, %c0_6] : memref<64x512xf32, #tpu.memory_space<vmem>>, vector<64x512xf32>
    %8 = tpu.iota {dimensions = array<i32: 1>} : vector<64x512xi32>
    %c2_i32 = arith.constant 2 : i32
    %c0_i32 = arith.constant 0 : i32
    %9 = arith.cmpi eq, %c2_i32, %c0_i32 : i32
    %c1_i32 = arith.constant 1 : i32
    %10 = arith.select %9, %c1_i32, %c2_i32 : i32
    %11 = vector.broadcast %10 : i32 to vector<64x512xi32>
    %12 = arith.remsi %8, %11 : vector<64x512xi32>
    %c0_i32_7 = arith.constant 0 : i32
    %13 = vector.broadcast %c0_i32_7 : i32 to vector<64x512xi32>
    %14 = arith.cmpi ne, %12, %13 : vector<64x512xi32>
    %c0_i32_8 = arith.constant 0 : i32
    %15 = vector.broadcast %c0_i32_8 : i32 to vector<64x512xi32>
    %16 = arith.cmpi slt, %12, %15 : vector<64x512xi32>
    %c0_i32_9 = arith.constant 0 : i32
    %17 = arith.cmpi slt, %10, %c0_i32_9 : i32
    %18 = vector.broadcast %17 : i1 to vector<64x512xi1>
    %19 = vector.broadcast %18 : vector<64x512xi1> to vector<64x512xi1>
    %20 = arith.xori %16, %19 : vector<64x512xi1>
    %21 = arith.andi %20, %14 : vector<64x512xi1>
    %22 = vector.broadcast %10 : i32 to vector<64x512xi32>
    %23 = arith.addi %12, %22 : vector<64x512xi32>
    %24 = arith.select %21, %23, %12 : vector<64x512xi1>, vector<64x512xi32>
    %c0_i32_10 = arith.constant 0 : i32
    %25 = vector.broadcast %c0_i32_10 : i32 to vector<64x512xi32>
    %26 = arith.cmpi eq, %24, %25 : vector<64x512xi32>
    %27 = vector.extract_strided_slice %3 {offsets = [0, 1], sizes = [64, 511], strides = [1, 1]} : vector<64x512xf32> to vector<64x511xf32>
    %28 = vector.extract_strided_slice %3 {offsets = [0, 0], sizes = [64, 1], strides = [1, 1]} : vector<64x512xf32> to vector<64x1xf32>
    %29 = tpu.concatenate %27, %28 in 1 : vector<64x511xf32>, vector<64x1xf32> -> vector<64x512xf32>
    %30 = vector.extract_strided_slice %3 {offsets = [0, 511], sizes = [64, 1], strides = [1, 1]} : vector<64x512xf32> to vector<64x1xf32>
    %31 = vector.extract_strided_slice %3 {offsets = [0, 0], sizes = [64, 511], strides = [1, 1]} : vector<64x512xf32> to vector<64x511xf32>
    %32 = tpu.concatenate %30, %31 in 1 : vector<64x1xf32>, vector<64x511xf32> -> vector<64x512xf32>
    %33 = arith.select %26, %29, %32 : vector<64x512xi1>, vector<64x512xf32>
    %34 = arith.mulf %3, %6 : vector<64x512xf32>
    %35 = arith.mulf %33, %7 : vector<64x512xf32>
    %36 = arith.addf %34, %35 : vector<64x512xf32>
    %cst_11 = arith.constant 0.0883883461 : f32
    %37 = vector.broadcast %cst_11 : f32 to vector<64x512xf32>
    %38 = arith.mulf %36, %37 : vector<64x512xf32>
    %c0_12 = arith.constant 0 : index
    %c0_13 = arith.constant 0 : index
    %39 = vector.load %arg5[%c0_12, %c0_13] : memref<64x512xf32, #tpu.memory_space<vmem>>, vector<64x512xf32>
    tpu.vector_store %arg5[%c0_12, %c0_13], %38 {strides = array<i32>} : memref<64x512xf32, #tpu.memory_space<vmem>>, vector<64x512xf32>,
    %40 = vector.extract_strided_slice %6 {offsets = [0, 0], sizes = [64, 256], strides = [1, 1]} : vector<64x512xf32> to vector<64x256xf32>
    %41 = vector.extract_strided_slice %7 {offsets = [0, 0], sizes = [64, 256], strides = [1, 1]} : vector<64x512xf32> to vector<64x256xf32>
    %42 = tpu.iota {dimensions = array<i32: 1>} : vector<64x256xi32>
    %c2_i32_14 = arith.constant 2 : i32
    %c0_i32_15 = arith.constant 0 : i32
    %43 = arith.cmpi eq, %c2_i32_14, %c0_i32_15 : i32
    %c1_i32_16 = arith.constant 1 : i32
    %44 = arith.select %43, %c1_i32_16, %c2_i32_14 : i32
    %45 = vector.broadcast %44 : i32 to vector<64x256xi32>
    %46 = arith.remsi %42, %45 : vector<64x256xi32>
    %c0_i32_17 = arith.constant 0 : i32
    %47 = vector.broadcast %c0_i32_17 : i32 to vector<64x256xi32>
    %48 = arith.cmpi ne, %46, %47 : vector<64x256xi32>
    %c0_i32_18 = arith.constant 0 : i32
    %49 = vector.broadcast %c0_i32_18 : i32 to vector<64x256xi32>
    %50 = arith.cmpi slt, %46, %49 : vector<64x256xi32>
    %c0_i32_19 = arith.constant 0 : i32
    %51 = arith.cmpi slt, %44, %c0_i32_19 : i32
    %52 = vector.broadcast %51 : i1 to vector<64x256xi1>
    %53 = vector.broadcast %52 : vector<64x256xi1> to vector<64x256xi1>
    %54 = arith.xori %50, %53 : vector<64x256xi1>
    %55 = arith.andi %54, %48 : vector<64x256xi1>
    %56 = vector.broadcast %44 : i32 to vector<64x256xi32>
    %57 = arith.addi %46, %56 : vector<64x256xi32>
    %58 = arith.select %55, %57, %46 : vector<64x256xi1>, vector<64x256xi32>
    %c0_i32_20 = arith.constant 0 : i32
    %59 = vector.broadcast %c0_i32_20 : i32 to vector<64x256xi32>
    %60 = arith.cmpi eq, %58, %59 : vector<64x256xi32>
    %61 = vector.extract_strided_slice %4 {offsets = [0, 1], sizes = [64, 255], strides = [1, 1]} : vector<64x256xf32> to vector<64x255xf32>
    %62 = vector.extract_strided_slice %4 {offsets = [0, 0], sizes = [64, 1], strides = [1, 1]} : vector<64x256xf32> to vector<64x1xf32>
    %63 = tpu.concatenate %61, %62 in 1 : vector<64x255xf32>, vector<64x1xf32> -> vector<64x256xf32>
    %64 = vector.extract_strided_slice %4 {offsets = [0, 255], sizes = [64, 1], strides = [1, 1]} : vector<64x256xf32> to vector<64x1xf32>
    %65 = vector.extract_strided_slice %4 {offsets = [0, 0], sizes = [64, 255], strides = [1, 1]} : vector<64x256xf32> to vector<64x255xf32>
    %66 = tpu.concatenate %64, %65 in 1 : vector<64x1xf32>, vector<64x255xf32> -> vector<64x256xf32>
    %67 = arith.select %60, %63, %66 : vector<64x256xi1>, vector<64x256xf32>
    %68 = arith.mulf %4, %40 : vector<64x256xf32>
    %69 = arith.mulf %67, %41 : vector<64x256xf32>
    %70 = arith.addf %68, %69 : vector<64x256xf32>
    %c0_21 = arith.constant 0 : index
    %c0_22 = arith.constant 0 : index
    %71 = vector.load %arg6[%c0_21, %c0_22] : memref<64x256xf32, #tpu.memory_space<vmem>>, vector<64x256xf32>
    tpu.vector_store %arg6[%c0_21, %c0_22], %70 {strides = array<i32>} : memref<64x256xf32, #tpu.memory_space<vmem>>, vector<64x256xf32>,
    %c0_23 = arith.constant 0 : index
    %c0_24 = arith.constant 0 : index
    %72 = vector.load %arg7[%c0_23, %c0_24] : memref<64x256xf32, #tpu.memory_space<vmem>>, vector<64x256xf32>
    tpu.vector_store %arg7[%c0_23, %c0_24], %5 {strides = array<i32>} : memref<64x256xf32, #tpu.memory_space<vmem>>, vector<64x256xf32>,
    return
  }
  func.func @transform_0(%arg0: i32) -> (i32, i32) {
    %c0_i32 = arith.constant 0 : i32
    %c0_i32_0 = arith.constant 0 : i32
    %c0_i32_1 = arith.constant 0 : i32
    return %c0_i32, %c0_i32_0 : i32, i32
  }
  func.func @transform_1(%arg0: i32) -> (i32, i32) {
    %c0_i32 = arith.constant 0 : i32
    %c0_i32_0 = arith.constant 0 : i32
    %c0_i32_1 = arith.constant 0 : i32
    return %c0_i32, %c0_i32_0 : i32, i32
  }
  func.func @transform_2(%arg0: i32) -> (i32, i32) {
    %c0_i32 = arith.constant 0 : i32
    %c0_i32_0 = arith.constant 0 : i32
    %c0_i32_1 = arith.constant 0 : i32
    return %c0_i32, %c0_i32_0 : i32, i32
  }
  func.func @transform_3(%arg0: i32) -> (i32, i32) {
    %c0_i32 = arith.constant 0 : i32
    %c0_i32_0 = arith.constant 0 : i32
    %c0_i32_1 = arith.constant 0 : i32
    return %c0_i32, %c0_i32_0 : i32, i32
  }
  func.func @transform_4(%arg0: i32) -> (i32, i32) {
    %c0_i32 = arith.constant 0 : i32
    %c0_i32_0 = arith.constant 0 : i32
    %c0_i32_1 = arith.constant 0 : i32
    return %c0_i32, %c0_i32_0 : i32, i32
  }
  func.func @transform_5(%arg0: i32) -> (i32, i32) {
    %c0_i32 = arith.constant 0 : i32
    %c0_i32_0 = arith.constant 0 : i32
    %c0_i32_1 = arith.constant 0 : i32
    return %c0_i32, %c0_i32_0 : i32, i32
  }
  func.func @transform_6(%arg0: i32) -> (i32, i32) {
    %c0_i32 = arith.constant 0 : i32
    %c0_i32_0 = arith.constant 0 : i32
    %c0_i32_1 = arith.constant 0 : i32
    return %c0_i32, %c0_i32_0 : i32, i32
  }
}

</mosaic_0001>

<llo_original>
// kernel: tpu_custom_call.1
$region0: #{tpu_custom_call.1}
  #allocation0 [shape = 'u32[]', space=smem, size = 0x4, offset = 0x4, fixed_abs, tag = 'smem constant byte address 0x4 - core index']
  #allocation1 [shape = 'u32[144,128]{1,0:T(1,128)}', space=vmem, size = 0x12000, scoped, tag = 'internal scratch']
  %s0 = inlined_call_operand.hbm [shape: bf16[64,128], index: 0, kind: input, shape index: {}]
  %s1 = inlined_call_operand.hbm [shape: bf16[128,1024], index: 1, kind: input, shape index: {}]
  %s2 = inlined_call_operand.hbm [shape: f32[64,512], index: 2, kind: input, shape index: {}]
  %s3 = inlined_call_operand.hbm [shape: f32[64,512], index: 3, kind: input, shape index: {}]
  %s4 = inlined_call_operand.hbm [shape: f32[64,512], index: 4, kind: output, shape index: {0}]
  %s5 = inlined_call_operand.hbm [shape: f32[64,256], index: 5, kind: output, shape index: {1}]
  %s6 = inlined_call_operand.hbm [shape: f32[64,256], index: 6, kind: output, shape index: {2}]
  %7 = xla_tuple %s4, %s5, %s6
  %s8 = sld [smem:[#allocation0]]
  $region58: #{tpu_custom_call.1} parent=0
    _
  %s10 = ssub.s32 1, %s8
  %s11 = scalar_select 0, %s10, %s8
  $region1: #{tpu_custom_call.1} parent=0
    #allocation2 [shape = 'u8[16384]{0}', space=vmem, size = 0x4000, scoped, tag = 'input window, operand 0, single buffered']
    #allocation3 [shape = 's32[1]{0}', space=sflag, size = 0x4, scoped, tag = 'scoped memory for tpu_custom_call.1']
    #allocation4 [shape = 's32[1]{0}', space=sflag, size = 0x4, scoped, tag = 'scoped memory for tpu_custom_call.1']
    #allocation5 [shape = 'u8[262144]{0}', space=vmem, size = 0x40000, scoped, tag = 'input window, operand 1, single buffered']
    #allocation6 [shape = 's32[1]{0}', space=sflag, size = 0x4, scoped, tag = 'scoped memory for tpu_custom_call.1']
    #allocation7 [shape = 'u8[131072]{0}', space=vmem, size = 0x20000, scoped, tag = 'input window, operand 2, single buffered']
    #allocation8 [shape = 'u8[131072]{0}', space=vmem, size = 0x20000, scoped, tag = 'input window, operand 3, single buffered']
    #allocation9 [shape = 's32[1]{0}', space=sflag, size = 0x4, scoped, tag = 'scoped memory for tpu_custom_call.1']
    #allocation10 [shape = 'u8[131072]{0}', space=vmem, size = 0x20000, scoped, tag = 'output window, operand 0, single buffered']
    #allocation11 [shape = 'u8[65536]{0}', space=vmem, size = 0x10000, scoped, tag = 'output window, operand 1, single buffered']
    #allocation12 [shape = 's32[1]{0}', space=sflag, size = 0x4, scoped, tag = 'scoped memory for tpu_custom_call.1']
    #allocation13 [shape = 'u8[65536]{0}', space=vmem, size = 0x10000, scoped, tag = 'output window, operand 2, single buffered']
    %12 = vsyncpa [#allocation3], 0
    %13 = vsyncpa [#allocation6], 0
    %14 = vsyncpa [#allocation9], 0
    %15 = vsyncpa [#allocation4], 0
    %16 = vsyncpa [#allocation12], 0
    // Predicated region
    $region2: #{tpu_custom_call.1} parent=1 // pred_check
      _
    $region3: #{tpu_custom_call.1} parent=1 // pred_check_branch
      %18 = sbr.rel (0) target = $region5
    $region4: #{tpu_custom_call.1} parent=1 // pred_region
      %s20 = ssub.s32 512, 512
      %21 = vsyncadd [#allocation3], %s20
      %s22 = sshll.u32 [#allocation2], 4
      %s23 = int_to_ptr.vmem [resolvable:$true] %s22
      %28 = dma.hbm_to_vmem [thread:$0]  %s0, 512, %s23, [#allocation3], 64, 64, 4
    $region5: #{tpu_custom_call.1} parent=1 // pred_fallthru
      _
    // Predicated region
    $region6: #{tpu_custom_call.1} parent=1 // pred_check
      _
    $region7: #{tpu_custom_call.1} parent=1 // pred_check_branch
      %30 = sbr.rel (0) target = $region9
    $region8: #{tpu_custom_call.1} parent=1 // pred_region
      %s32 = ssub.s32 8192, 8192
      %33 = vsyncadd [#allocation6], %s32
      %s34 = sshll.u32 [#allocation5], 4
      %s35 = int_to_ptr.vmem [resolvable:$true] %s34
      %40 = dma.hbm_to_vmem [thread:$0]  %s1, 8192, %s35, [#allocation6], 512, 512, 32
    $region9: #{tpu_custom_call.1} parent=1 // pred_fallthru
      _
    // Predicated region
    $region10: #{tpu_custom_call.1} parent=1 // pred_check
      _
    $region11: #{tpu_custom_call.1} parent=1 // pred_check_branch
      %42 = sbr.rel (0) target = $region13
    $region12: #{tpu_custom_call.1} parent=1 // pred_region
      %s44 = ssub.s32 4096, 4096
      %45 = vsyncadd [#allocation6], %s44
      %s46 = sshll.u32 [#allocation7], 4
      %s47 = int_to_ptr.vmem [resolvable:$true] %s46
      %52 = dma.hbm_to_vmem [thread:$0]  %s2, 4096, %s47, [#allocation6], 512, 512, 32
    $region13: #{tpu_custom_call.1} parent=1 // pred_fallthru
      _
    // Predicated region
    $region14: #{tpu_custom_call.1} parent=1 // pred_check
      _
    $region15: #{tpu_custom_call.1} parent=1 // pred_check_branch
      %54 = sbr.rel (0) target = $region17
    $region16: #{tpu_custom_call.1} parent=1 // pred_region
      %s56 = ssub.s32 4096, 4096
      %57 = vsyncadd [#allocation9], %s56
      %s58 = sshll.u32 [#allocation8], 4
      %s59 = int_to_ptr.vmem [resolvable:$true] %s58
      %64 = dma.hbm_to_vmem [thread:$0]  %s3, 4096, %s59, [#allocation9], 512, 512, 32
    $region17: #{tpu_custom_call.1} parent=1 // pred_fallthru
      _
    // Predicated region
    $region18: #{tpu_custom_call.1} parent=1 // pred_check
      _
    $region19: #{tpu_custom_call.1} parent=1 // pred_check_branch
      %66 = sbr.rel (0) target = $region21
    $region20: #{tpu_custom_call.1} parent=1 // pred_region
      %67 = dma.done [#allocation3], 512
    $region21: #{tpu_custom_call.1} parent=1 // pred_fallthru
      _
    // Predicated region
    $region22: #{tpu_custom_call.1} parent=1 // pred_check
      _
    $region23: #{tpu_custom_call.1} parent=1 // pred_check_branch
      %69 = sbr.rel (0) target = $region25
    $region24: #{tpu_custom_call.1} parent=1 // pred_region
      %70 = dma.done [#allocation6], 8192
    $region25: #{tpu_custom_call.1} parent=1 // pred_fallthru
      _
    // Predicated region
    $region26: #{tpu_custom_call.1} parent=1 // pred_check
      _
    $region27: #{tpu_custom_call.1} parent=1 // pred_check_branch
      %72 = sbr.rel (0) target = $region29
    $region28: #{tpu_custom_call.1} parent=1 // pred_region
      %73 = dma.done [#allocation6], 4096
    $region29: #{tpu_custom_call.1} parent=1 // pred_fallthru
      _
    // Predicated region
    $region30: #{tpu_custom_call.1} parent=1 // pred_check
      _
    $region31: #{tpu_custom_call.1} parent=1 // pred_check_branch
      %75 = sbr.rel (0) target = $region33
    $region32: #{tpu_custom_call.1} parent=1 // pred_region
      %76 = dma.done [#allocation9], 4096
    $region33: #{tpu_custom_call.1} parent=1 // pred_fallthru
      _
    %v78 = vld [vmem:[#allocation2] sm:$0xf]
    %v79 = vld [vmem:[#allocation2 + $0x4] sm:$0xf]
    %v80 = vld [vmem:[#allocation2 + $0x8] sm:$0xf]
    %v81 = vld [vmem:[#allocation2 + $0xc] sm:$0xf]
    %v82 = vld [vmem:[#allocation2 + $0x10] sm:$0xf]
    %v83 = vld [vmem:[#allocation2 + $0x14] sm:$0xf]
    %v84 = vld [vmem:[#allocation2 + $0x18] sm:$0xf]
    %v85 = vld [vmem:[#allocation2 + $0x1c] sm:$0xf]
    %v86 = vld [vmem:[#allocation5] sm:$0xff]
    %v87 = vld [vmem:[#allocation5 + $0x8] sm:$0xff]
    %v88 = vld [vmem:[#allocation5 + $0x10] sm:$0xff]
    %v89 = vld [vmem:[#allocation5 + $0x18] sm:$0xff]
    %v90 = vld [vmem:[#allocation5 + $0x20] sm:$0xff]
    %v91 = vld [vmem:[#allocation5 + $0x28] sm:$0xff]
    %v92 = vld [vmem:[#allocation5 + $0x30] sm:$0xff]
    %v93 = vld [vmem:[#allocation5 + $0x38] sm:$0xff]
    %v94 = vld [vmem:[#allocation5 + $0x40] sm:$0xff]
    %v95 = vld [vmem:[#allocation5 + $0x48] sm:$0xff]
    %v96 = vld [vmem:[#allocation5 + $0x50] sm:$0xff]
    %v97 = vld [vmem:[#allocation5 + $0x58] sm:$0xff]
    %v98 = vld [vmem:[#allocation5 + $0x60] sm:$0xff]
    %v99 = vld [vmem:[#allocation5 + $0x68] sm:$0xff]
    %v100 = vld [vmem:[#allocation5 + $0x70] sm:$0xff]
    %v101 = vld [vmem:[#allocation5 + $0x78] sm:$0xff]
    %v102 = vld [vmem:[#allocation5 + $0x80] sm:$0xff]
    %v103 = vld [vmem:[#allocation5 + $0x88] sm:$0xff]
    %v104 = vld [vmem:[#allocation5 + $0x90] sm:$0xff]
    %v105 = vld [vmem:[#allocation5 + $0x98] sm:$0xff]
    %v106 = vld [vmem:[#allocation5 + $0xa0] sm:$0xff]
    %v107 = vld [vmem:[#allocation5 + $0xa8] sm:$0xff]
    %v108 = vld [vmem:[#allocation5 + $0xb0] sm:$0xff]
    %v109 = vld [vmem:[#allocation5 + $0xb8] sm:$0xff]
    %v110 = vld [vmem:[#allocation5 + $0xc0] sm:$0xff]
    %v111 = vld [vmem:[#allocation5 + $0xc8] sm:$0xff]
    %v112 = vld [vmem:[#allocation5 + $0xd0] sm:$0xff]
    %v113 = vld [vmem:[#allocation5 + $0xd8] sm:$0xff]
    %v114 = vld [vmem:[#allocation5 + $0xe0] sm:$0xff]
    %v115 = vld [vmem:[#allocation5 + $0xe8] sm:$0xff]
    %v116 = vld [vmem:[#allocation5 + $0xf0] sm:$0xff]
    %v117 = vld [vmem:[#allocation5 + $0xf8] sm:$0xff]
    %v118 = vld [vmem:[#allocation5 + $0x100] sm:$0xff]
    %v119 = vld [vmem:[#allocation5 + $0x108] sm:$0xff]
    %v120 = vld [vmem:[#allocation5 + $0x110] sm:$0xff]
    %v121 = vld [vmem:[#allocation5 + $0x118] sm:$0xff]
    %v122 = vld [vmem:[#allocation5 + $0x120] sm:$0xff]
    %v123 = vld [vmem:[#allocation5 + $0x128] sm:$0xff]
    %v124 = vld [vmem:[#allocation5 + $0x130] sm:$0xff]
    %v125 = vld [vmem:[#allocation5 + $0x138] sm:$0xff]
    %v126 = vld [vmem:[#allocation5 + $0x140] sm:$0xff]
    %v127 = vld [vmem:[#allocation5 + $0x148] sm:$0xff]
    %v128 = vld [vmem:[#allocation5 + $0x150] sm:$0xff]
    %v129 = vld [vmem:[#allocation5 + $0x158] sm:$0xff]
    %v130 = vld [vmem:[#allocation5 + $0x160] sm:$0xff]
    %v131 = vld [vmem:[#allocation5 + $0x168] sm:$0xff]
    %v132 = vld [vmem:[#allocation5 + $0x170] sm:$0xff]
    %v133 = vld [vmem:[#allocation5 + $0x178] sm:$0xff]
    %v134 = vld [vmem:[#allocation5 + $0x180] sm:$0xff]
    %v135 = vld [vmem:[#allocation5 + $0x188] sm:$0xff]
    %v136 = vld [vmem:[#allocation5 + $0x190] sm:$0xff]
    %v137 = vld [vmem:[#allocation5 + $0x198] sm:$0xff]
    %v138 = vld [vmem:[#allocation5 + $0x1a0] sm:$0xff]
    %v139 = vld [vmem:[#allocation5 + $0x1a8] sm:$0xff]
    %v140 = vld [vmem:[#allocation5 + $0x1b0] sm:$0xff]
    %v141 = vld [vmem:[#allocation5 + $0x1b8] sm:$0xff]
    %v142 = vld [vmem:[#allocation5 + $0x1c0] sm:$0xff]
    %v143 = vld [vmem:[#allocation5 + $0x1c8] sm:$0xff]
    %v144 = vld [vmem:[#allocation5 + $0x1d0] sm:$0xff]
    %v145 = vld [vmem:[#allocation5 + $0x1d8] sm:$0xff]
    %v146 = vld [vmem:[#allocation5 + $0x1e0] sm:$0xff]
    %v147 = vld [vmem:[#allocation5 + $0x1e8] sm:$0xff]
    %v148 = vld [vmem:[#allocation5 + $0x1f0] sm:$0xff]
    %v149 = vld [vmem:[#allocation5 + $0x1f8] sm:$0xff]
    %v158 = vunpack.c.l.b16 %v78
    %v159 = vunpack.c.l.b16 %v79
    %v160 = vunpack.c.l.b16 %v80
    %v161 = vunpack.c.l.b16 %v81
    %v162 = vunpack.c.l.b16 %v82
    %v163 = vunpack.c.l.b16 %v83
    %v164 = vunpack.c.l.b16 %v84
    %v165 = vunpack.c.l.b16 %v85
    %v166 = vpack.c.b16 %v159, %v158
    %v167 = vpack.c.b16 %v161, %v160
    %v168 = vpack.c.b16 %v163, %v162
    %v169 = vpack.c.b16 %v165, %v164
    %v238 = vunpack.c.l.b16 %v86
    %v239 = vunpack.c.h.b16 %v86
    %v240 = vunpack.c.l.b16 %v87
    %v241 = vunpack.c.h.b16 %v87
    %v242 = vunpack.c.l.b16 %v88
    %v243 = vunpack.c.h.b16 %v88
    %v244 = vunpack.c.l.b16 %v89
    %v245 = vunpack.c.h.b16 %v89
    %v246 = vunpack.c.l.b16 %v90
    %v247 = vunpack.c.h.b16 %v90
    %v248 = vunpack.c.l.b16 %v91
    %v249 = vunpack.c.h.b16 %v91
    %v250 = vunpack.c.l.b16 %v92
    %v251 = vunpack.c.h.b16 %v92
    %v252 = vunpack.c.l.b16 %v93
    %v253 = vunpack.c.h.b16 %v93
    %v254 = vunpack.c.l.b16 %v94
    %v255 = vunpack.c.h.b16 %v94
    %v256 = vunpack.c.l.b16 %v95
    %v257 = vunpack.c.h.b16 %v95
    %v258 = vunpack.c.l.b16 %v96
    %v259 = vunpack.c.h.b16 %v96
    %v260 = vunpack.c.l.b16 %v97
    %v261 = vunpack.c.h.b16 %v97
    %v262 = vunpack.c.l.b16 %v98
    %v263 = vunpack.c.h.b16 %v98
    %v264 = vunpack.c.l.b16 %v99
    %v265 = vunpack.c.h.b16 %v99
    %v266 = vunpack.c.l.b16 %v100
    %v267 = vunpack.c.h.b16 %v100
    %v268 = vunpack.c.l.b16 %v101
    %v269 = vunpack.c.h.b16 %v101
    %v270 = vunpack.c.l.b16 %v102
    %v271 = vunpack.c.h.b16 %v102
    %v272 = vunpack.c.l.b16 %v103
    %v273 = vunpack.c.h.b16 %v103
    %v274 = vunpack.c.l.b16 %v104
    %v275 = vunpack.c.h.b16 %v104
    %v276 = vunpack.c.l.b16 %v105
    %v277 = vunpack.c.h.b16 %v105
    %v278 = vunpack.c.l.b16 %v106
    %v279 = vunpack.c.h.b16 %v106
    %v280 = vunpack.c.l.b16 %v107
    %v281 = vunpack.c.h.b16 %v107
    %v282 = vunpack.c.l.b16 %v108
    %v283 = vunpack.c.h.b16 %v108
    %v284 = vunpack.c.l.b16 %v109
    %v285 = vunpack.c.h.b16 %v109
    %v286 = vunpack.c.l.b16 %v110
    %v287 = vunpack.c.h.b16 %v110
    %v288 = vunpack.c.l.b16 %v111
    %v289 = vunpack.c.h.b16 %v111
    %v290 = vunpack.c.l.b16 %v112
    %v291 = vunpack.c.h.b16 %v112
    %v292 = vunpack.c.l.b16 %v113
    %v293 = vunpack.c.h.b16 %v113
    %v294 = vunpack.c.l.b16 %v114
    %v295 = vunpack.c.h.b16 %v114
    %v296 = vunpack.c.l.b16 %v115
    %v297 = vunpack.c.h.b16 %v115
    %v298 = vunpack.c.l.b16 %v116
    %v299 = vunpack.c.h.b16 %v116
    %v300 = vunpack.c.l.b16 %v117
    %v301 = vunpack.c.h.b16 %v117
    %v302 = vunpack.c.l.b16 %v118
    %v303 = vunpack.c.h.b16 %v118
    %v304 = vunpack.c.l.b16 %v119
    %v305 = vunpack.c.h.b16 %v119
    %v306 = vunpack.c.l.b16 %v120
    %v307 = vunpack.c.h.b16 %v120
    %v308 = vunpack.c.l.b16 %v121
    %v309 = vunpack.c.h.b16 %v121
    %v310 = vunpack.c.l.b16 %v122
    %v311 = vunpack.c.h.b16 %v122
    %v312 = vunpack.c.l.b16 %v123
    %v313 = vunpack.c.h.b16 %v123
    %v314 = vunpack.c.l.b16 %v124
    %v315 = vunpack.c.h.b16 %v124
    %v316 = vunpack.c.l.b16 %v125
    %v317 = vunpack.c.h.b16 %v125
    %v318 = vunpack.c.l.b16 %v126
    %v319 = vunpack.c.h.b16 %v126
    %v320 = vunpack.c.l.b16 %v127
    %v321 = vunpack.c.h.b16 %v127
    %v322 = vunpack.c.l.b16 %v128
    %v323 = vunpack.c.h.b16 %v128
    %v324 = vunpack.c.l.b16 %v129
    %v325 = vunpack.c.h.b16 %v129
    %v326 = vunpack.c.l.b16 %v130
    %v327 = vunpack.c.h.b16 %v130
    %v328 = vunpack.c.l.b16 %v131
    %v329 = vunpack.c.h.b16 %v131
    %v330 = vunpack.c.l.b16 %v132
    %v331 = vunpack.c.h.b16 %v132
    %v332 = vunpack.c.l.b16 %v133
    %v333 = vunpack.c.h.b16 %v133
    %v334 = vunpack.c.l.b16 %v134
    %v335 = vunpack.c.h.b16 %v134
    %v336 = vunpack.c.l.b16 %v135
    %v337 = vunpack.c.h.b16 %v135
    %v338 = vunpack.c.l.b16 %v136
    %v339 = vunpack.c.h.b16 %v136
    %v340 = vunpack.c.l.b16 %v137
    %v341 = vunpack.c.h.b16 %v137
    %v342 = vunpack.c.l.b16 %v138
    %v343 = vunpack.c.h.b16 %v138
    %v344 = vunpack.c.l.b16 %v139
    %v345 = vunpack.c.h.b16 %v139
    %v346 = vunpack.c.l.b16 %v140
    %v347 = vunpack.c.h.b16 %v140
    %v348 = vunpack.c.l.b16 %v141
    %v349 = vunpack.c.h.b16 %v141
    %v350 = vunpack.c.l.b16 %v142
    %v351 = vunpack.c.h.b16 %v142
    %v352 = vunpack.c.l.b16 %v143
    %v353 = vunpack.c.h.b16 %v143
    %v354 = vunpack.c.l.b16 %v144
    %v355 = vunpack.c.h.b16 %v144
    %v356 = vunpack.c.l.b16 %v145
    %v357 = vunpack.c.h.b16 %v145
    %v358 = vunpack.c.l.b16 %v146
    %v359 = vunpack.c.h.b16 %v146
    %v360 = vunpack.c.l.b16 %v147
    %v361 = vunpack.c.h.b16 %v147
    %v362 = vunpack.c.l.b16 %v148
    %v363 = vunpack.c.h.b16 %v148
    %v364 = vunpack.c.l.b16 %v149
    %v365 = vunpack.c.h.b16 %v149
    %v366 = vpack.c.b16 %v246, %v238
    %v367 = vpack.c.b16 %v247, %v239
    %v368 = vpack.c.b16 %v248, %v240
    %v369 = vpack.c.b16 %v249, %v241
    %v370 = vpack.c.b16 %v250, %v242
    %v371 = vpack.c.b16 %v251, %v243
    %v372 = vpack.c.b16 %v252, %v244
    %v373 = vpack.c.b16 %v253, %v245
    %v374 = vpack.c.b16 %v262, %v254
    %v375 = vpack.c.b16 %v263, %v255
    %v376 = vpack.c.b16 %v264, %v256
    %v377 = vpack.c.b16 %v265, %v257
    %v378 = vpack.c.b16 %v266, %v258
    %v379 = vpack.c.b16 %v267, %v259
    %v380 = vpack.c.b16 %v268, %v260
    %v381 = vpack.c.b16 %v269, %v261
    %v382 = vpack.c.b16 %v278, %v270
    %v383 = vpack.c.b16 %v279, %v271
    %v384 = vpack.c.b16 %v280, %v272
    %v385 = vpack.c.b16 %v281, %v273
    %v386 = vpack.c.b16 %v282, %v274
    %v387 = vpack.c.b16 %v283, %v275
    %v388 = vpack.c.b16 %v284, %v276
    %v389 = vpack.c.b16 %v285, %v277
    %v390 = vpack.c.b16 %v294, %v286
    %v391 = vpack.c.b16 %v295, %v287
    %v392 = vpack.c.b16 %v296, %v288
    %v393 = vpack.c.b16 %v297, %v289
    %v394 = vpack.c.b16 %v298, %v290
    %v395 = vpack.c.b16 %v299, %v291
    %v396 = vpack.c.b16 %v300, %v292
    %v397 = vpack.c.b16 %v301, %v293
    %v398 = vpack.c.b16 %v310, %v302
    %v399 = vpack.c.b16 %v311, %v303
    %v400 = vpack.c.b16 %v312, %v304
    %v401 = vpack.c.b16 %v313, %v305
    %v402 = vpack.c.b16 %v314, %v306
    %v403 = vpack.c.b16 %v315, %v307
    %v404 = vpack.c.b16 %v316, %v308
    %v405 = vpack.c.b16 %v317, %v309
    %v406 = vpack.c.b16 %v326, %v318
    %v407 = vpack.c.b16 %v327, %v319
    %v408 = vpack.c.b16 %v328, %v320
    %v409 = vpack.c.b16 %v329, %v321
    %v410 = vpack.c.b16 %v330, %v322
    %v411 = vpack.c.b16 %v331, %v323
    %v412 = vpack.c.b16 %v332, %v324
    %v413 = vpack.c.b16 %v333, %v325
    %v414 = vpack.c.b16 %v342, %v334
    %v415 = vpack.c.b16 %v343, %v335
    %v416 = vpack.c.b16 %v344, %v336
    %v417 = vpack.c.b16 %v345, %v337
    %v418 = vpack.c.b16 %v346, %v338
    %v419 = vpack.c.b16 %v347, %v339
    %v420 = vpack.c.b16 %v348, %v340
    %v421 = vpack.c.b16 %v349, %v341
    %v422 = vpack.c.b16 %v358, %v350
    %v423 = vpack.c.b16 %v359, %v351
    %v424 = vpack.c.b16 %v360, %v352
    %v425 = vpack.c.b16 %v361, %v353
    %v426 = vpack.c.b16 %v362, %v354
    %v427 = vpack.c.b16 %v363, %v355
    %v428 = vpack.c.b16 %v364, %v356
    %v429 = vpack.c.b16 %v365, %v357
    %494 = vmatprep.subr.bf16.mxu0 %v367
    %495 = vmatpush1.bf16.msra.mxu0 %v366
    %496 = vmatprep.subr.bf16.mxu0 %v375
    %497 = vmatpush1.bf16.msra.mxu0 %v374
    %498 = vmatprep.subr.bf16.mxu0 %v383
    %499 = vmatpush1.bf16.msra.mxu0 %v382
    %500 = vmatprep.subr.bf16.mxu0 %v391
    %501 = vmatpush1.bf16.msra.mxu0 %v390
    %502 = vmatprep.subr.bf16.mxu0 %v399
    %503 = vmatpush1.bf16.msra.mxu0 %v398
    %504 = vmatprep.subr.bf16.mxu0 %v407
    %505 = vmatpush1.bf16.msra.mxu0 %v406
    %506 = vmatprep.subr.bf16.mxu0 %v415
    %507 = vmatpush1.bf16.msra.mxu0 %v414
    %508 = vmatprep.subr.bf16.mxu0 %v423
    %509 = vmatpush1.bf16.msra.mxu0 %v422
    %510 = vmatprep.subr.bf16.mxu0 0
    %511 = vmatpush1.bf16.msra.mxu0 0
    %512 = vmatprep.subr.bf16.mxu0 0
    %513 = vmatpush1.bf16.msra.mxu0 0
    %514 = vmatprep.subr.bf16.mxu0 0
    %515 = vmatpush1.bf16.msra.mxu0 0
    %516 = vmatprep.subr.bf16.mxu0 0
    %517 = vmatpush1.bf16.msra.mxu0 0
    %518 = vmatprep.subr.bf16.mxu0 0
    %519 = vmatpush1.bf16.msra.mxu0 0
    %520 = vmatprep.subr.bf16.mxu0 0
    %521 = vmatpush1.bf16.msra.mxu0 0
    %522 = vmatprep.subr.bf16.mxu0 0
    %523 = vmatpush1.bf16.msra.mxu0 0
    %524 = vmatprep.subr.bf16.mxu0 0
    %525 = vmatpush1.bf16.msra.mxu0 0
    %526 = vmatprep.mubr.bf16.mxu0 0
    %527 = vmatmul.mubr.bf16.gmra.mrb[0].mxu0 %v166
    %v528 = vpop.f32.mrb[0].mxu0
    %v529 = vadd.f32 0.0, %v528
    %v530 = vpop.f32.mrb[0].mxu0
    %v531 = vadd.f32 0.0, %v530
    %v532 = vpop.f32.mrb[0].mxu0
    %v533 = vadd.f32 0.0, %v532
    %v534 = vpop.f32.mrb[0].mxu0
    %v535 = vadd.f32 0.0, %v534
    %536 = vmatprep.mubr.bf16.mxu0 0
    %537 = vmatmul.mubr.bf16.gmra.mrb[0].mxu0 %v167
    %v538 = vpop.f32.mrb[0].mxu0
    %v539 = vadd.f32 0.0, %v538
    %v540 = vpop.f32.mrb[0].mxu0
    %v541 = vadd.f32 0.0, %v540
    %v542 = vpop.f32.mrb[0].mxu0
    %v543 = vadd.f32 0.0, %v542
    %v544 = vpop.f32.mrb[0].mxu0
    %v545 = vadd.f32 0.0, %v544
    %546 = vmatprep.mubr.bf16.mxu0 0
    %547 = vmatmul.mubr.bf16.gmra.mrb[0].mxu0 %v168
    %v548 = vpop.f32.mrb[0].mxu0
    %v549 = vadd.f32 0.0, %v548
    %v550 = vpop.f32.mrb[0].mxu0
    %v551 = vadd.f32 0.0, %v550
    %v552 = vpop.f32.mrb[0].mxu0
    %v553 = vadd.f32 0.0, %v552
    %v554 = vpop.f32.mrb[0].mxu0
    %v555 = vadd.f32 0.0, %v554
    %556 = vmatprep.mubr.bf16.mxu0 0
    %557 = vmatmul.mubr.bf16.gmra.mrb[0].mxu0 %v169
    %v558 = vpop.f32.mrb[0].mxu0
    %v559 = vadd.f32 0.0, %v558
    %v560 = vpop.f32.mrb[0].mxu0
    %v561 = vadd.f32 0.0, %v560
    %v562 = vpop.f32.mrb[0].mxu0
    %v563 = vadd.f32 0.0, %v562
    %v564 = vpop.f32.mrb[0].mxu0
    %v565 = vadd.f32 0.0, %v564
    %566 = vdwg.mxu0
    %567 = vmatprep.subr.bf16.mxu0 %v369
    %568 = vmatpush1.bf16.msra.mxu0 %v368
    %569 = vmatprep.subr.bf16.mxu0 %v377
    %570 = vmatpush1.bf16.msra.mxu0 %v376
    %571 = vmatprep.subr.bf16.mxu0 %v385
    %572 = vmatpush1.bf16.msra.mxu0 %v384
    %573 = vmatprep.subr.bf16.mxu0 %v393
    %574 = vmatpush1.bf16.msra.mxu0 %v392
    %575 = vmatprep.subr.bf16.mxu0 %v401
    %576 = vmatpush1.bf16.msra.mxu0 %v400
    %577 = vmatprep.subr.bf16.mxu0 %v409
    %578 = vmatpush1.bf16.msra.mxu0 %v408
    %579 = vmatprep.subr.bf16.mxu0 %v417
    %580 = vmatpush1.bf16.msra.mxu0 %v416
    %581 = vmatprep.subr.bf16.mxu0 %v425
    %582 = vmatpush1.bf16.msra.mxu0 %v424
    %583 = vmatprep.subr.bf16.mxu0 0
    %584 = vmatpush1.bf16.msra.mxu0 0
    %585 = vmatprep.subr.bf16.mxu0 0
    %586 = vmatpush1.bf16.msra.mxu0 0
    %587 = vmatprep.subr.bf16.mxu0 0
    %588 = vmatpush1.bf16.msra.mxu0 0
    %589 = vmatprep.subr.bf16.mxu0 0
    %590 = vmatpush1.bf16.msra.mxu0 0
    %591 = vmatprep.subr.bf16.mxu0 0
    %592 = vmatpush1.bf16.msra.mxu0 0
    %593 = vmatprep.subr.bf16.mxu0 0
    %594 = vmatpush1.bf16.msra.mxu0 0
    %595 = vmatprep.subr.bf16.mxu0 0
    %596 = vmatpush1.bf16.msra.mxu0 0
    %597 = vmatprep.subr.bf16.mxu0 0
    %598 = vmatpush1.bf16.msra.mxu0 0
    %599 = vmatprep.mubr.bf16.mxu0 0
    %600 = vmatmul.mubr.bf16.gmra.mrb[0].mxu0 %v166
    %v601 = vpop.f32.mrb[0].mxu0
    %v602 = vadd.f32 0.0, %v601
    %v603 = vpop.f32.mrb[0].mxu0
    %v604 = vadd.f32 0.0, %v603
    %v605 = vpop.f32.mrb[0].mxu0
    %v606 = vadd.f32 0.0, %v605
    %v607 = vpop.f32.mrb[0].mxu0
    %v608 = vadd.f32 0.0, %v607
    %609 = vmatprep.mubr.bf16.mxu0 0
    %610 = vmatmul.mubr.bf16.gmra.mrb[0].mxu0 %v167
    %v611 = vpop.f32.mrb[0].mxu0
    %v612 = vadd.f32 0.0, %v611
    %v613 = vpop.f32.mrb[0].mxu0
    %v614 = vadd.f32 0.0, %v613
    %v615 = vpop.f32.mrb[0].mxu0
    %v616 = vadd.f32 0.0, %v615
    %v617 = vpop.f32.mrb[0].mxu0
    %v618 = vadd.f32 0.0, %v617
    %619 = vmatprep.mubr.bf16.mxu0 0
    %620 = vmatmul.mubr.bf16.gmra.mrb[0].mxu0 %v168
    %v621 = vpop.f32.mrb[0].mxu0
    %v622 = vadd.f32 0.0, %v621
    %v623 = vpop.f32.mrb[0].mxu0
    %v624 = vadd.f32 0.0, %v623
    %v625 = vpop.f32.mrb[0].mxu0
    %v626 = vadd.f32 0.0, %v625
    %v627 = vpop.f32.mrb[0].mxu0
    %v628 = vadd.f32 0.0, %v627
    %629 = vmatprep.mubr.bf16.mxu0 0
    %630 = vmatmul.mubr.bf16.gmra.mrb[0].mxu0 %v169
    %v631 = vpop.f32.mrb[0].mxu0
    %v632 = vadd.f32 0.0, %v631
    %v633 = vpop.f32.mrb[0].mxu0
    %v634 = vadd.f32 0.0, %v633
    %v635 = vpop.f32.mrb[0].mxu0
    %v636 = vadd.f32 0.0, %v635
    %v637 = vpop.f32.mrb[0].mxu0
    %v638 = vadd.f32 0.0, %v637
    %639 = vdwg.mxu0
    %640 = vmatprep.subr.bf16.mxu0 %v371
    %641 = vmatpush1.bf16.msra.mxu0 %v370
    %642 = vmatprep.subr.bf16.mxu0 %v379
    %643 = vmatpush1.bf16.msra.mxu0 %v378
    %644 = vmatprep.subr.bf16.mxu0 %v387
    %645 = vmatpush1.bf16.msra.mxu0 %v386
    %646 = vmatprep.subr.bf16.mxu0 %v395
    %647 = vmatpush1.bf16.msra.mxu0 %v394
    %648 = vmatprep.subr.bf16.mxu0 %v403
    %649 = vmatpush1.bf16.msra.mxu0 %v402
    %650 = vmatprep.subr.bf16.mxu0 %v411
    %651 = vmatpush1.bf16.msra.mxu0 %v410
    %652 = vmatprep.subr.bf16.mxu0 %v419
    %653 = vmatpush1.bf16.msra.mxu0 %v418
    %654 = vmatprep.subr.bf16.mxu0 %v427
    %655 = vmatpush1.bf16.msra.mxu0 %v426
    %656 = vmatprep.subr.bf16.mxu0 0
    %657 = vmatpush1.bf16.msra.mxu0 0
    %658 = vmatprep.subr.bf16.mxu0 0
    %659 = vmatpush1.bf16.msra.mxu0 0
    %660 = vmatprep.subr.bf16.mxu0 0
    %661 = vmatpush1.bf16.msra.mxu0 0
    %662 = vmatprep.subr.bf16.mxu0 0
    %663 = vmatpush1.bf16.msra.mxu0 0
    %664 = vmatprep.subr.bf16.mxu0 0
    %665 = vmatpush1.bf16.msra.mxu0 0
    %666 = vmatprep.subr.bf16.mxu0 0
    %667 = vmatpush1.bf16.msra.mxu0 0
    %668 = vmatprep.subr.bf16.mxu0 0
    %669 = vmatpush1.bf16.msra.mxu0 0
    %670 = vmatprep.subr.bf16.mxu0 0
    %671 = vmatpush1.bf16.msra.mxu0 0
    %672 = vmatprep.mubr.bf16.mxu0 0
    %673 = vmatmul.mubr.bf16.gmra.mrb[0].mxu0 %v166
    %v674 = vpop.f32.mrb[0].mxu0
    %v675 = vadd.f32 0.0, %v674
    %v676 = vpop.f32.mrb[0].mxu0
    %v677 = vadd.f32 0.0, %v676
    %v678 = vpop.f32.mrb[0].mxu0
    %v679 = vadd.f32 0.0, %v678
    %v680 = vpop.f32.mrb[0].mxu0
    %v681 = vadd.f32 0.0, %v680
    %682 = vmatprep.mubr.bf16.mxu0 0
    %683 = vmatmul.mubr.bf16.gmra.mrb[0].mxu0 %v167
    %v684 = vpop.f32.mrb[0].mxu0
    %v685 = vadd.f32 0.0, %v684
    %v686 = vpop.f32.mrb[0].mxu0
    %v687 = vadd.f32 0.0, %v686
    %v688 = vpop.f32.mrb[0].mxu0
    %v689 = vadd.f32 0.0, %v688
    %v690 = vpop.f32.mrb[0].mxu0
    %v691 = vadd.f32 0.0, %v690
    %692 = vmatprep.mubr.bf16.mxu0 0
    %693 = vmatmul.mubr.bf16.gmra.mrb[0].mxu0 %v168
    %v694 = vpop.f32.mrb[0].mxu0
    %v695 = vadd.f32 0.0, %v694
    %v696 = vpop.f32.mrb[0].mxu0
    %v697 = vadd.f32 0.0, %v696
    %v698 = vpop.f32.mrb[0].mxu0
    %v699 = vadd.f32 0.0, %v698
    %v700 = vpop.f32.mrb[0].mxu0
    %v701 = vadd.f32 0.0, %v700
    %702 = vmatprep.mubr.bf16.mxu0 0
    %703 = vmatmul.mubr.bf16.gmra.mrb[0].mxu0 %v169
    %v704 = vpop.f32.mrb[0].mxu0
    %v705 = vadd.f32 0.0, %v704
    %v706 = vpop.f32.mrb[0].mxu0
    %v707 = vadd.f32 0.0, %v706
    %v708 = vpop.f32.mrb[0].mxu0
    %v709 = vadd.f32 0.0, %v708
    %v710 = vpop.f32.mrb[0].mxu0
    %v711 = vadd.f32 0.0, %v710
    %712 = vdwg.mxu0
    %713 = vmatprep.subr.bf16.mxu0 %v373
    %714 = vmatpush1.bf16.msra.mxu0 %v372
    %715 = vmatprep.subr.bf16.mxu0 %v381
    %716 = vmatpush1.bf16.msra.mxu0 %v380
    %717 = vmatprep.subr.bf16.mxu0 %v389
    %718 = vmatpush1.bf16.msra.mxu0 %v388
    %719 = vmatprep.subr.bf16.mxu0 %v397
    %720 = vmatpush1.bf16.msra.mxu0 %v396
    %721 = vmatprep.subr.bf16.mxu0 %v405
    %722 = vmatpush1.bf16.msra.mxu0 %v404
    %723 = vmatprep.subr.bf16.mxu0 %v413
    %724 = vmatpush1.bf16.msra.mxu0 %v412
    %725 = vmatprep.subr.bf16.mxu0 %v421
    %726 = vmatpush1.bf16.msra.mxu0 %v420
    %727 = vmatprep.subr.bf16.mxu0 %v429
    %728 = vmatpush1.bf16.msra.mxu0 %v428
    %729 = vmatprep.subr.bf16.mxu0 0
    %730 = vmatpush1.bf16.msra.mxu0 0
    %731 = vmatprep.subr.bf16.mxu0 0
    %732 = vmatpush1.bf16.msra.mxu0 0
    %733 = vmatprep.subr.bf16.mxu0 0
    %734 = vmatpush1.bf16.msra.mxu0 0
    %735 = vmatprep.subr.bf16.mxu0 0
    %736 = vmatpush1.bf16.msra.mxu0 0
    %737 = vmatprep.subr.bf16.mxu0 0
    %738 = vmatpush1.bf16.msra.mxu0 0
    %739 = vmatprep.subr.bf16.mxu0 0
    %740 = vmatpush1.bf16.msra.mxu0 0
    %741 = vmatprep.subr.bf16.mxu0 0
    %742 = vmatpush1.bf16.msra.mxu0 0
    %743 = vmatprep.subr.bf16.mxu0 0
    %744 = vmatpush1.bf16.msra.mxu0 0
    %745 = vmatprep.mubr.bf16.mxu0 0
    %746 = vmatmul.mubr.bf16.gmra.mrb[0].mxu0 %v166
    %v747 = vpop.f32.mrb[0].mxu0
    %v748 = vadd.f32 0.0, %v747
    %v749 = vpop.f32.mrb[0].mxu0
    %v750 = vadd.f32 0.0, %v749
    %v751 = vpop.f32.mrb[0].mxu0
    %v752 = vadd.f32 0.0, %v751
    %v753 = vpop.f32.mrb[0].mxu0
    %v754 = vadd.f32 0.0, %v753
    %755 = vmatprep.mubr.bf16.mxu0 0
    %756 = vmatmul.mubr.bf16.gmra.mrb[0].mxu0 %v167
    %v757 = vpop.f32.mrb[0].mxu0
    %v758 = vadd.f32 0.0, %v757
    %v759 = vpop.f32.mrb[0].mxu0
    %v760 = vadd.f32 0.0, %v759
    %v761 = vpop.f32.mrb[0].mxu0
    %v762 = vadd.f32 0.0, %v761
    %v763 = vpop.f32.mrb[0].mxu0
    %v764 = vadd.f32 0.0, %v763
    %765 = vmatprep.mubr.bf16.mxu0 0
    %766 = vmatmul.mubr.bf16.gmra.mrb[0].mxu0 %v168
    %v767 = vpop.f32.mrb[0].mxu0
    %v768 = vadd.f32 0.0, %v767
    %v769 = vpop.f32.mrb[0].mxu0
    %v770 = vadd.f32 0.0, %v769
    %v771 = vpop.f32.mrb[0].mxu0
    %v772 = vadd.f32 0.0, %v771
    %v773 = vpop.f32.mrb[0].mxu0
    %v774 = vadd.f32 0.0, %v773
    %775 = vmatprep.mubr.bf16.mxu0 0
    %776 = vmatmul.mubr.bf16.gmra.mrb[0].mxu0 %v169
    %v777 = vpop.f32.mrb[0].mxu0
    %v778 = vadd.f32 0.0, %v777
    %v779 = vpop.f32.mrb[0].mxu0
    %v780 = vadd.f32 0.0, %v779
    %v781 = vpop.f32.mrb[0].mxu0
    %v782 = vadd.f32 0.0, %v781
    %v783 = vpop.f32.mrb[0].mxu0
    %v784 = vadd.f32 0.0, %v783
    %785 = vdwg.mxu0
    %v786 = vld [vmem:[#allocation7] sm:$0xff]
    %v787 = vld [vmem:[#allocation7 + $0x8] sm:$0xff]
    %v788 = vld [vmem:[#allocation7 + $0x10] sm:$0xff]
    %v789 = vld [vmem:[#allocation7 + $0x18] sm:$0xff]
    %v790 = vld [vmem:[#allocation7 + $0x20] sm:$0xff]
    %v791 = vld [vmem:[#allocation7 + $0x28] sm:$0xff]
    %v792 = vld [vmem:[#allocation7 + $0x30] sm:$0xff]
    %v793 = vld [vmem:[#allocation7 + $0x38] sm:$0xff]
    %v794 = vld [vmem:[#allocation7 + $0x40] sm:$0xff]
    %v795 = vld [vmem:[#allocation7 + $0x48] sm:$0xff]
    %v796 = vld [vmem:[#allocation7 + $0x50] sm:$0xff]
    %v797 = vld [vmem:[#allocation7 + $0x58] sm:$0xff]
    %v798 = vld [vmem:[#allocation7 + $0x60] sm:$0xff]
    %v799 = vld [vmem:[#allocation7 + $0x68] sm:$0xff]
    %v800 = vld [vmem:[#allocation7 + $0x70] sm:$0xff]
    %v801 = vld [vmem:[#allocation7 + $0x78] sm:$0xff]
    %v802 = vld [vmem:[#allocation7 + $0x80] sm:$0xff]
    %v803 = vld [vmem:[#allocation7 + $0x88] sm:$0xff]
    %v804 = vld [vmem:[#allocation7 + $0x90] sm:$0xff]
    %v805 = vld [vmem:[#allocation7 + $0x98] sm:$0xff]
    %v806 = vld [vmem:[#allocation7 + $0xa0] sm:$0xff]
    %v807 = vld [vmem:[#allocation7 + $0xa8] sm:$0xff]
    %v808 = vld [vmem:[#allocation7 + $0xb0] sm:$0xff]
    %v809 = vld [vmem:[#allocation7 + $0xb8] sm:$0xff]
    %v810 = vld [vmem:[#allocation7 + $0xc0] sm:$0xff]
    %v811 = vld [vmem:[#allocation7 + $0xc8] sm:$0xff]
    %v812 = vld [vmem:[#allocation7 + $0xd0] sm:$0xff]
    %v813 = vld [vmem:[#allocation7 + $0xd8] sm:$0xff]
    %v814 = vld [vmem:[#allocation7 + $0xe0] sm:$0xff]
    %v815 = vld [vmem:[#allocation7 + $0xe8] sm:$0xff]
    %v816 = vld [vmem:[#allocation7 + $0xf0] sm:$0xff]
    %v817 = vld [vmem:[#allocation7 + $0xf8] sm:$0xff]
    %v818 = vld [vmem:[#allocation8] sm:$0xff]
    %v819 = vld [vmem:[#allocation8 + $0x8] sm:$0xff]
    %v820 = vld [vmem:[#allocation8 + $0x10] sm:$0xff]
    %v821 = vld [vmem:[#allocation8 + $0x18] sm:$0xff]
    %v822 = vld [vmem:[#allocation8 + $0x20] sm:$0xff]
    %v823 = vld [vmem:[#allocation8 + $0x28] sm:$0xff]
    %v824 = vld [vmem:[#allocation8 + $0x30] sm:$0xff]
    %v825 = vld [vmem:[#allocation8 + $0x38] sm:$0xff]
    %v826 = vld [vmem:[#allocation8 + $0x40] sm:$0xff]
    %v827 = vld [vmem:[#allocation8 + $0x48] sm:$0xff]
    %v828 = vld [vmem:[#allocation8 + $0x50] sm:$0xff]
    %v829 = vld [vmem:[#allocation8 + $0x58] sm:$0xff]
    %v830 = vld [vmem:[#allocation8 + $0x60] sm:$0xff]
    %v831 = vld [vmem:[#allocation8 + $0x68] sm:$0xff]
    %v832 = vld [vmem:[#allocation8 + $0x70] sm:$0xff]
    %v833 = vld [vmem:[#allocation8 + $0x78] sm:$0xff]
    %v834 = vld [vmem:[#allocation8 + $0x80] sm:$0xff]
    %v835 = vld [vmem:[#allocation8 + $0x88] sm:$0xff]
    %v836 = vld [vmem:[#allocation8 + $0x90] sm:$0xff]
    %v837 = vld [vmem:[#allocation8 + $0x98] sm:$0xff]
    %v838 = vld [vmem:[#allocation8 + $0xa0] sm:$0xff]
    %v839 = vld [vmem:[#allocation8 + $0xa8] sm:$0xff]
    %v840 = vld [vmem:[#allocation8 + $0xb0] sm:$0xff]
    %v841 = vld [vmem:[#allocation8 + $0xb8] sm:$0xff]
    %v842 = vld [vmem:[#allocation8 + $0xc0] sm:$0xff]
    %v843 = vld [vmem:[#allocation8 + $0xc8] sm:$0xff]
    %v844 = vld [vmem:[#allocation8 + $0xd0] sm:$0xff]
    %v845 = vld [vmem:[#allocation8 + $0xd8] sm:$0xff]
    %v846 = vld [vmem:[#allocation8 + $0xe0] sm:$0xff]
    %v847 = vld [vmem:[#allocation8 + $0xe8] sm:$0xff]
    %v848 = vld [vmem:[#allocation8 + $0xf0] sm:$0xff]
    %v849 = vld [vmem:[#allocation8 + $0xf8] sm:$0xff]
    %v850 = vlaneseq
    %v851 = vand.u32 %v850, 127
    %v852 = vadd.s32 %v851, 128
    %v853 = vadd.s32 %v851, 256
    %v854 = vadd.s32 %v851, 384
    %vm855 = vcmp.lt.s32.totalorder %v851, 0
    %v856 = vsub.s32 0, %v851
    %v857 = vsel %vm855, %v856, %v851
    %v858 = vshrl.u32 %v857, 1
    %v859 = vand.u32 %v857, 1
    %v860 = vsub.s32 0, %v859
    %v861 = vsel %vm855, %v860, %v859
    %vm862 = vcmp.lt.s32.totalorder %v852, 0
    %v863 = vsub.s32 0, %v852
    %v864 = vsel %vm862, %v863, %v852
    %v865 = vshrl.u32 %v864, 1
    %v866 = vand.u32 %v864, 1
    %v867 = vsub.s32 0, %v866
    %v868 = vsel %vm862, %v867, %v866
    %vm869 = vcmp.lt.s32.totalorder %v853, 0
    %v870 = vsub.s32 0, %v853
    %v871 = vsel %vm869, %v870, %v853
    %v872 = vshrl.u32 %v871, 1
    %v873 = vand.u32 %v871, 1
    %v874 = vsub.s32 0, %v873
    %v875 = vsel %vm869, %v874, %v873
    %vm876 = vcmp.lt.s32.totalorder %v854, 0
    %v877 = vsub.s32 0, %v854
    %v878 = vsel %vm876, %v877, %v854
    %v879 = vshrl.u32 %v878, 1
    %v880 = vand.u32 %v878, 1
    %v881 = vsub.s32 0, %v880
    %v882 = vsel %vm876, %v881, %v880
    %vm883 = vcmp.ne.s32.totalorder %v861, 0
    %vm884 = vcmp.ne.s32.totalorder %v868, 0
    %vm885 = vcmp.ne.s32.totalorder %v875, 0
    %vm886 = vcmp.ne.s32.totalorder %v882, 0
    %vm887 = vcmp.lt.s32.totalorder %v861, 0
    %vm888 = vcmp.lt.s32.totalorder %v868, 0
    %vm889 = vcmp.lt.s32.totalorder %v875, 0
    %vm890 = vcmp.lt.s32.totalorder %v882, 0
    %vm891 = vmand %vm887, %vm883
    %vm892 = vmand %vm888, %vm884
    %vm893 = vmand %vm889, %vm885
    %vm894 = vmand %vm890, %vm886
    %v895 = vadd.s32 %v861, 2
    %v896 = vadd.s32 %v868, 2
    %v897 = vadd.s32 %v875, 2
    %v898 = vadd.s32 %v882, 2
    %v899 = vsel %vm891, %v895, %v861
    %v900 = vsel %vm892, %v896, %v868
    %v901 = vsel %vm893, %v897, %v875
    %v902 = vsel %vm894, %v898, %v882
    %vm903 = vcmp.eq.s32.totalorder %v899, 0
    %vm904 = vcmp.eq.s32.totalorder %v900, 0
    %vm905 = vcmp.eq.s32.totalorder %v901, 0
    %vm906 = vcmp.eq.s32.totalorder %v902, 0
    %939 = vrot.lane.b32.xlu0 %v529, 127
    %v940 = vpop.permute.xlu0 %939
    %941 = vrot.lane.b32.xlu0 %v531, 127
    %v942 = vpop.permute.xlu0 %941
    %943 = vrot.lane.b32.xlu0 %v602, 127
    %v944 = vpop.permute.xlu0 %943
    %945 = vrot.lane.b32.xlu0 %v604, 127
    %v946 = vpop.permute.xlu0 %945
    %947 = vrot.lane.b32.xlu0 %v533, 127
    %v948 = vpop.permute.xlu0 %947
    %949 = vrot.lane.b32.xlu0 %v535, 127
    %v950 = vpop.permute.xlu0 %949
    %951 = vrot.lane.b32.xlu0 %v606, 127
    %v952 = vpop.permute.xlu0 %951
    %953 = vrot.lane.b32.xlu0 %v608, 127
    %v954 = vpop.permute.xlu0 %953
    %955 = vrot.lane.b32.xlu0 %v539, 127
    %v956 = vpop.permute.xlu0 %955
    %957 = vrot.lane.b32.xlu0 %v541, 127
    %v958 = vpop.permute.xlu0 %957
    %959 = vrot.lane.b32.xlu0 %v612, 127
    %v960 = vpop.permute.xlu0 %959
    %961 = vrot.lane.b32.xlu0 %v614, 127
    %v962 = vpop.permute.xlu0 %961
    %963 = vrot.lane.b32.xlu0 %v543, 127
    %v964 = vpop.permute.xlu0 %963
    %965 = vrot.lane.b32.xlu0 %v545, 127
    %v966 = vpop.permute.xlu0 %965
    %967 = vrot.lane.b32.xlu0 %v616, 127
    %v968 = vpop.permute.xlu0 %967
    %969 = vrot.lane.b32.xlu0 %v618, 127
    %v970 = vpop.permute.xlu0 %969
    %971 = vrot.lane.b32.xlu0 %v549, 127
    %v972 = vpop.permute.xlu0 %971
    %973 = vrot.lane.b32.xlu0 %v551, 127
    %v974 = vpop.permute.xlu0 %973
    %975 = vrot.lane.b32.xlu0 %v622, 127
    %v976 = vpop.permute.xlu0 %975
    %977 = vrot.lane.b32.xlu0 %v624, 127
    %v978 = vpop.permute.xlu0 %977
    %979 = vrot.lane.b32.xlu0 %v553, 127
    %v980 = vpop.permute.xlu0 %979
    %981 = vrot.lane.b32.xlu0 %v555, 127
    %v982 = vpop.permute.xlu0 %981
    %983 = vrot.lane.b32.xlu0 %v626, 127
    %v984 = vpop.permute.xlu0 %983
    %985 = vrot.lane.b32.xlu0 %v628, 127
    %v986 = vpop.permute.xlu0 %985
    %987 = vrot.lane.b32.xlu0 %v559, 127
    %v988 = vpop.permute.xlu0 %987
    %989 = vrot.lane.b32.xlu0 %v561, 127
    %v990 = vpop.permute.xlu0 %989
    %991 = vrot.lane.b32.xlu0 %v632, 127
    %v992 = vpop.permute.xlu0 %991
    %993 = vrot.lane.b32.xlu0 %v634, 127
    %v994 = vpop.permute.xlu0 %993
    %995 = vrot.lane.b32.xlu0 %v563, 127
    %v996 = vpop.permute.xlu0 %995
    %997 = vrot.lane.b32.xlu0 %v565, 127
    %v998 = vpop.permute.xlu0 %997
    %999 = vrot.lane.b32.xlu0 %v636, 127
    %v1000 = vpop.permute.xlu0 %999
    %1001 = vrot.lane.b32.xlu0 %v638, 127
    %v1002 = vpop.permute.xlu0 %1001
    %vm1003 = vcmask 1039360
    %v1004 = vsel %vm1003, %v940, %v942
    %v1005 = vsel %vm1003, %v942, %v944
    %v1006 = vsel %vm1003, %v944, %v946
    %v1007 = vsel %vm1003, %v948, %v950
    %v1008 = vsel %vm1003, %v950, %v952
    %v1009 = vsel %vm1003, %v952, %v954
    %v1010 = vsel %vm1003, %v956, %v958
    %v1011 = vsel %vm1003, %v958, %v960
    %v1012 = vsel %vm1003, %v960, %v962
    %v1013 = vsel %vm1003, %v964, %v966
    %v1014 = vsel %vm1003, %v966, %v968
    %v1015 = vsel %vm1003, %v968, %v970
    %v1016 = vsel %vm1003, %v972, %v974
    %v1017 = vsel %vm1003, %v974, %v976
    %v1018 = vsel %vm1003, %v976, %v978
    %v1019 = vsel %vm1003, %v980, %v982
    %v1020 = vsel %vm1003, %v982, %v984
    %v1021 = vsel %vm1003, %v984, %v986
    %v1022 = vsel %vm1003, %v988, %v990
    %v1023 = vsel %vm1003, %v990, %v992
    %v1024 = vsel %vm1003, %v992, %v994
    %v1025 = vsel %vm1003, %v996, %v998
    %v1026 = vsel %vm1003, %v998, %v1000
    %v1027 = vsel %vm1003, %v1000, %v1002
    %v1068 = vsel %vm1003, %v946, %v940
    %v1069 = vsel %vm1003, %v954, %v948
    %v1070 = vsel %vm1003, %v962, %v956
    %v1071 = vsel %vm1003, %v970, %v964
    %v1072 = vsel %vm1003, %v978, %v972
    %v1073 = vsel %vm1003, %v986, %v980
    %v1074 = vsel %vm1003, %v994, %v988
    %v1075 = vsel %vm1003, %v1002, %v996
    %1076 = vrot.lane.b32.xlu0 %v604, 1
    %v1077 = vpop.permute.xlu0 %1076
    %1078 = vrot.lane.b32.xlu0 %v608, 1
    %v1079 = vpop.permute.xlu0 %1078
    %1080 = vrot.lane.b32.xlu0 %v614, 1
    %v1081 = vpop.permute.xlu0 %1080
    %1082 = vrot.lane.b32.xlu0 %v618, 1
    %v1083 = vpop.permute.xlu0 %1082
    %1084 = vrot.lane.b32.xlu0 %v624, 1
    %v1085 = vpop.permute.xlu0 %1084
    %1086 = vrot.lane.b32.xlu0 %v628, 1
    %v1087 = vpop.permute.xlu0 %1086
    %1088 = vrot.lane.b32.xlu0 %v634, 1
    %v1089 = vpop.permute.xlu0 %1088
    %1090 = vrot.lane.b32.xlu0 %v638, 1
    %v1091 = vpop.permute.xlu0 %1090
    %1100 = vrot.lane.b32.xlu0 %v529, 1
    %v1101 = vpop.permute.xlu0 %1100
    %1102 = vrot.lane.b32.xlu0 %v531, 1
    %v1103 = vpop.permute.xlu0 %1102
    %1104 = vrot.lane.b32.xlu0 %v602, 1
    %v1105 = vpop.permute.xlu0 %1104
    %1106 = vrot.lane.b32.xlu0 %v533, 1
    %v1107 = vpop.permute.xlu0 %1106
    %1108 = vrot.lane.b32.xlu0 %v535, 1
    %v1109 = vpop.permute.xlu0 %1108
    %1110 = vrot.lane.b32.xlu0 %v606, 1
    %v1111 = vpop.permute.xlu0 %1110
    %1112 = vrot.lane.b32.xlu0 %v539, 1
    %v1113 = vpop.permute.xlu0 %1112
    %1114 = vrot.lane.b32.xlu0 %v541, 1
    %v1115 = vpop.permute.xlu0 %1114
    %1116 = vrot.lane.b32.xlu0 %v612, 1
    %v1117 = vpop.permute.xlu0 %1116
    %1118 = vrot.lane.b32.xlu0 %v543, 1
    %v1119 = vpop.permute.xlu0 %1118
    %1120 = vrot.lane.b32.xlu0 %v545, 1
    %v1121 = vpop.permute.xlu0 %1120
    %1122 = vrot.lane.b32.xlu0 %v616, 1
    %v1123 = vpop.permute.xlu0 %1122
    %1124 = vrot.lane.b32.xlu0 %v549, 1
    %v1125 = vpop.permute.xlu0 %1124
    %1126 = vrot.lane.b32.xlu0 %v551, 1
    %v1127 = vpop.permute.xlu0 %1126
    %1128 = vrot.lane.b32.xlu0 %v622, 1
    %v1129 = vpop.permute.xlu0 %1128
    %1130 = vrot.lane.b32.xlu0 %v553, 1
    %v1131 = vpop.permute.xlu0 %1130
    %1132 = vrot.lane.b32.xlu0 %v555, 1
    %v1133 = vpop.permute.xlu0 %1132
    %1134 = vrot.lane.b32.xlu0 %v626, 1
    %v1135 = vpop.permute.xlu0 %1134
    %1136 = vrot.lane.b32.xlu0 %v559, 1
    %v1137 = vpop.permute.xlu0 %1136
    %1138 = vrot.lane.b32.xlu0 %v561, 1
    %v1139 = vpop.permute.xlu0 %1138
    %1140 = vrot.lane.b32.xlu0 %v632, 1
    %v1141 = vpop.permute.xlu0 %1140
    %1142 = vrot.lane.b32.xlu0 %v563, 1
    %v1143 = vpop.permute.xlu0 %1142
    %1144 = vrot.lane.b32.xlu0 %v565, 1
    %v1145 = vpop.permute.xlu0 %1144
    %1146 = vrot.lane.b32.xlu0 %v636, 1
    %v1147 = vpop.permute.xlu0 %1146
    %vm1148 = vcmask 7168
    %v1149 = vsel %vm1148, %v1101, %v1103
    %v1150 = vsel %vm1148, %v1103, %v1105
    %v1151 = vsel %vm1148, %v1105, %v1077
    %v1152 = vsel %vm1148, %v1107, %v1109
    %v1153 = vsel %vm1148, %v1109, %v1111
    %v1154 = vsel %vm1148, %v1111, %v1079
    %v1155 = vsel %vm1148, %v1113, %v1115
    %v1156 = vsel %vm1148, %v1115, %v1117
    %v1157 = vsel %vm1148, %v1117, %v1081
    %v1158 = vsel %vm1148, %v1119, %v1121
    %v1159 = vsel %vm1148, %v1121, %v1123
    %v1160 = vsel %vm1148, %v1123, %v1083
    %v1161 = vsel %vm1148, %v1125, %v1127
    %v1162 = vsel %vm1148, %v1127, %v1129
    %v1163 = vsel %vm1148, %v1129, %v1085
    %v1164 = vsel %vm1148, %v1131, %v1133
    %v1165 = vsel %vm1148, %v1133, %v1135
    %v1166 = vsel %vm1148, %v1135, %v1087
    %v1167 = vsel %vm1148, %v1137, %v1139
    %v1168 = vsel %vm1148, %v1139, %v1141
    %v1169 = vsel %vm1148, %v1141, %v1089
    %v1170 = vsel %vm1148, %v1143, %v1145
    %v1171 = vsel %vm1148, %v1145, %v1147
    %v1172 = vsel %vm1148, %v1147, %v1091
    %v1205 = vsel %vm1148, %v1077, %v1101
    %v1206 = vsel %vm1148, %v1079, %v1107
    %v1207 = vsel %vm1148, %v1081, %v1113
    %v1208 = vsel %vm1148, %v1083, %v1119
    %v1209 = vsel %vm1148, %v1085, %v1125
    %v1210 = vsel %vm1148, %v1087, %v1131
    %v1211 = vsel %vm1148, %v1089, %v1137
    %v1212 = vsel %vm1148, %v1091, %v1143
    %v1213 = vsel %vm903, %v1004, %v1205
    %v1214 = vsel %vm904, %v1005, %v1149
    %v1215 = vsel %vm905, %v1006, %v1150
    %v1216 = vsel %vm906, %v1068, %v1151
    %v1217 = vsel %vm903, %v1007, %v1206
    %v1218 = vsel %vm904, %v1008, %v1152
    %v1219 = vsel %vm905, %v1009, %v1153
    %v1220 = vsel %vm906, %v1069, %v1154
    %v1221 = vsel %vm903, %v1010, %v1207
    %v1222 = vsel %vm904, %v1011, %v1155
    %v1223 = vsel %vm905, %v1012, %v1156
    %v1224 = vsel %vm906, %v1070, %v1157
    %v1225 = vsel %vm903, %v1013, %v1208
    %v1226 = vsel %vm904, %v1014, %v1158
    %v1227 = vsel %vm905, %v1015, %v1159
    %v1228 = vsel %vm906, %v1071, %v1160
    %v1229 = vsel %vm903, %v1016, %v1209
    %v1230 = vsel %vm904, %v1017, %v1161
    %v1231 = vsel %vm905, %v1018, %v1162
    %v1232 = vsel %vm906, %v1072, %v1163
    %v1233 = vsel %vm903, %v1019, %v1210
    %v1234 = vsel %vm904, %v1020, %v1164
    %v1235 = vsel %vm905, %v1021, %v1165
    %v1236 = vsel %vm906, %v1073, %v1166
    %v1237 = vsel %vm903, %v1022, %v1211
    %v1238 = vsel %vm904, %v1023, %v1167
    %v1239 = vsel %vm905, %v1024, %v1168
    %v1240 = vsel %vm906, %v1074, %v1169
    %v1241 = vsel %vm903, %v1025, %v1212
    %v1242 = vsel %vm904, %v1026, %v1170
    %v1243 = vsel %vm905, %v1027, %v1171
    %v1244 = vsel %vm906, %v1075, %v1172
    %v1245 = vmul.f32 %v529, %v786
    %v1246 = vmul.f32 %v531, %v787
    %v1247 = vmul.f32 %v602, %v788
    %v1248 = vmul.f32 %v604, %v789
    %v1249 = vmul.f32 %v533, %v790
    %v1250 = vmul.f32 %v535, %v791
    %v1251 = vmul.f32 %v606, %v792
    %v1252 = vmul.f32 %v608, %v793
    %v1253 = vmul.f32 %v539, %v794
    %v1254 = vmul.f32 %v541, %v795
    %v1255 = vmul.f32 %v612, %v796
    %v1256 = vmul.f32 %v614, %v797
    %v1257 = vmul.f32 %v543, %v798
    %v1258 = vmul.f32 %v545, %v799
    %v1259 = vmul.f32 %v616, %v800
    %v1260 = vmul.f32 %v618, %v801
    %v1261 = vmul.f32 %v549, %v802
    %v1262 = vmul.f32 %v551, %v803
    %v1263 = vmul.f32 %v622, %v804
    %v1264 = vmul.f32 %v624, %v805
    %v1265 = vmul.f32 %v553, %v806
    %v1266 = vmul.f32 %v555, %v807
    %v1267 = vmul.f32 %v626, %v808
    %v1268 = vmul.f32 %v628, %v809
    %v1269 = vmul.f32 %v559, %v810
    %v1270 = vmul.f32 %v561, %v811
    %v1271 = vmul.f32 %v632, %v812
    %v1272 = vmul.f32 %v634, %v813
    %v1273 = vmul.f32 %v563, %v814
    %v1274 = vmul.f32 %v565, %v815
    %v1275 = vmul.f32 %v636, %v816
    %v1276 = vmul.f32 %v638, %v817
    %v1277 = vmul.f32 %v1213, %v818
    %v1278 = vmul.f32 %v1214, %v819
    %v1279 = vmul.f32 %v1215, %v820
    %v1280 = vmul.f32 %v1216, %v821
    %v1281 = vmul.f32 %v1217, %v822
    %v1282 = vmul.f32 %v1218, %v823
    %v1283 = vmul.f32 %v1219, %v824
    %v1284 = vmul.f32 %v1220, %v825
    %v1285 = vmul.f32 %v1221, %v826
    %v1286 = vmul.f32 %v1222, %v827
    %v1287 = vmul.f32 %v1223, %v828
    %v1288 = vmul.f32 %v1224, %v829
    %v1289 = vmul.f32 %v1225, %v830
    %v1290 = vmul.f32 %v1226, %v831
    %v1291 = vmul.f32 %v1227, %v832
    %v1292 = vmul.f32 %v1228, %v833
    %v1293 = vmul.f32 %v1229, %v834
    %v1294 = vmul.f32 %v1230, %v835
    %v1295 = vmul.f32 %v1231, %v836
    %v1296 = vmul.f32 %v1232, %v837
    %v1297 = vmul.f32 %v1233, %v838
    %v1298 = vmul.f32 %v1234, %v839
    %v1299 = vmul.f32 %v1235, %v840
    %v1300 = vmul.f32 %v1236, %v841
    %v1301 = vmul.f32 %v1237, %v842
    %v1302 = vmul.f32 %v1238, %v843
    %v1303 = vmul.f32 %v1239, %v844
    %v1304 = vmul.f32 %v1240, %v845
    %v1305 = vmul.f32 %v1241, %v846
    %v1306 = vmul.f32 %v1242, %v847
    %v1307 = vmul.f32 %v1243, %v848
    %v1308 = vmul.f32 %v1244, %v849
    %v1309 = vadd.f32 %v1245, %v1277
    %v1310 = vadd.f32 %v1246, %v1278
    %v1311 = vadd.f32 %v1247, %v1279
    %v1312 = vadd.f32 %v1248, %v1280
    %v1313 = vadd.f32 %v1249, %v1281
    %v1314 = vadd.f32 %v1250, %v1282
    %v1315 = vadd.f32 %v1251, %v1283
    %v1316 = vadd.f32 %v1252, %v1284
    %v1317 = vadd.f32 %v1253, %v1285
    %v1318 = vadd.f32 %v1254, %v1286
    %v1319 = vadd.f32 %v1255, %v1287
    %v1320 = vadd.f32 %v1256, %v1288
    %v1321 = vadd.f32 %v1257, %v1289
    %v1322 = vadd.f32 %v1258, %v1290
    %v1323 = vadd.f32 %v1259, %v1291
    %v1324 = vadd.f32 %v1260, %v1292
    %v1325 = vadd.f32 %v1261, %v1293
    %v1326 = vadd.f32 %v1262, %v1294
    %v1327 = vadd.f32 %v1263, %v1295
    %v1328 = vadd.f32 %v1264, %v1296
    %v1329 = vadd.f32 %v1265, %v1297
    %v1330 = vadd.f32 %v1266, %v1298
    %v1331 = vadd.f32 %v1267, %v1299
    %v1332 = vadd.f32 %v1268, %v1300
    %v1333 = vadd.f32 %v1269, %v1301
    %v1334 = vadd.f32 %v1270, %v1302
    %v1335 = vadd.f32 %v1271, %v1303
    %v1336 = vadd.f32 %v1272, %v1304
    %v1337 = vadd.f32 %v1273, %v1305
    %v1338 = vadd.f32 %v1274, %v1306
    %v1339 = vadd.f32 %v1275, %v1307
    %v1340 = vadd.f32 %v1276, %v1308
    %v1341 = vmul.f32 %v1309, 0.088388346
    %v1342 = vmul.f32 %v1310, 0.088388346
    %v1343 = vmul.f32 %v1311, 0.088388346
    %v1344 = vmul.f32 %v1312, 0.088388346
    %v1345 = vmul.f32 %v1313, 0.088388346
    %v1346 = vmul.f32 %v1314, 0.088388346
    %v1347 = vmul.f32 %v1315, 0.088388346
    %v1348 = vmul.f32 %v1316, 0.088388346
    %v1349 = vmul.f32 %v1317, 0.088388346
    %v1350 = vmul.f32 %v1318, 0.088388346
    %v1351 = vmul.f32 %v1319, 0.088388346
    %v1352 = vmul.f32 %v1320, 0.088388346
    %v1353 = vmul.f32 %v1321, 0.088388346
    %v1354 = vmul.f32 %v1322, 0.088388346
    %v1355 = vmul.f32 %v1323, 0.088388346
    %v1356 = vmul.f32 %v1324, 0.088388346
    %v1357 = vmul.f32 %v1325, 0.088388346
    %v1358 = vmul.f32 %v1326, 0.088388346
    %v1359 = vmul.f32 %v1327, 0.088388346
    %v1360 = vmul.f32 %v1328, 0.088388346
    %v1361 = vmul.f32 %v1329, 0.088388346
    %v1362 = vmul.f32 %v1330, 0.088388346
    %v1363 = vmul.f32 %v1331, 0.088388346
    %v1364 = vmul.f32 %v1332, 0.088388346
    %v1365 = vmul.f32 %v1333, 0.088388346
    %v1366 = vmul.f32 %v1334, 0.088388346
    %v1367 = vmul.f32 %v1335, 0.088388346
    %v1368 = vmul.f32 %v1336, 0.088388346
    %v1369 = vmul.f32 %v1337, 0.088388346
    %v1370 = vmul.f32 %v1338, 0.088388346
    %v1371 = vmul.f32 %v1339, 0.088388346
    %v1372 = vmul.f32 %v1340, 0.088388346
    %1373 = vst [vmem:[#allocation10] sm:$0xff] %v1341
    %1374 = vst [vmem:[#allocation10 + $0x8] sm:$0xff] %v1342
    %1375 = vst [vmem:[#allocation10 + $0x10] sm:$0xff] %v1343
    %1376 = vst [vmem:[#allocation10 + $0x18] sm:$0xff] %v1344
    %1377 = vst [vmem:[#allocation10 + $0x20] sm:$0xff] %v1345
    %1378 = vst [vmem:[#allocation10 + $0x28] sm:$0xff] %v1346
    %1379 = vst [vmem:[#allocation10 + $0x30] sm:$0xff] %v1347
    %1380 = vst [vmem:[#allocation10 + $0x38] sm:$0xff] %v1348
    %1381 = vst [vmem:[#allocation10 + $0x40] sm:$0xff] %v1349
    %1382 = vst [vmem:[#allocation10 + $0x48] sm:$0xff] %v1350
    %1383 = vst [vmem:[#allocation10 + $0x50] sm:$0xff] %v1351
    %1384 = vst [vmem:[#allocation10 + $0x58] sm:$0xff] %v1352
    %1385 = vst [vmem:[#allocation10 + $0x60] sm:$0xff] %v1353
    %1386 = vst [vmem:[#allocation10 + $0x68] sm:$0xff] %v1354
    %1387 = vst [vmem:[#allocation10 + $0x70] sm:$0xff] %v1355
    %1388 = vst [vmem:[#allocation10 + $0x78] sm:$0xff] %v1356
    %1389 = vst [vmem:[#allocation10 + $0x80] sm:$0xff] %v1357
    %1390 = vst [vmem:[#allocation10 + $0x88] sm:$0xff] %v1358
    %1391 = vst [vmem:[#allocation10 + $0x90] sm:$0xff] %v1359
    %1392 = vst [vmem:[#allocation10 + $0x98] sm:$0xff] %v1360
    %1393 = vst [vmem:[#allocation10 + $0xa0] sm:$0xff] %v1361
    %1394 = vst [vmem:[#allocation10 + $0xa8] sm:$0xff] %v1362
    %1395 = vst [vmem:[#allocation10 + $0xb0] sm:$0xff] %v1363
    %1396 = vst [vmem:[#allocation10 + $0xb8] sm:$0xff] %v1364
    %1397 = vst [vmem:[#allocation10 + $0xc0] sm:$0xff] %v1365
    %1398 = vst [vmem:[#allocation10 + $0xc8] sm:$0xff] %v1366
    %1399 = vst [vmem:[#allocation10 + $0xd0] sm:$0xff] %v1367
    %1400 = vst [vmem:[#allocation10 + $0xd8] sm:$0xff] %v1368
    %1401 = vst [vmem:[#allocation10 + $0xe0] sm:$0xff] %v1369
    %1402 = vst [vmem:[#allocation10 + $0xe8] sm:$0xff] %v1370
    %1403 = vst [vmem:[#allocation10 + $0xf0] sm:$0xff] %v1371
    %1404 = vst [vmem:[#allocation10 + $0xf8] sm:$0xff] %v1372
    %1421 = vrot.lane.b32.xlu0 %v675, 127
    %v1422 = vpop.permute.xlu0 %1421
    %1423 = vrot.lane.b32.xlu0 %v677, 127
    %v1424 = vpop.permute.xlu0 %1423
    %1425 = vrot.lane.b32.xlu0 %v679, 127
    %v1426 = vpop.permute.xlu0 %1425
    %1427 = vrot.lane.b32.xlu0 %v681, 127
    %v1428 = vpop.permute.xlu0 %1427
    %1429 = vrot.lane.b32.xlu0 %v685, 127
    %v1430 = vpop.permute.xlu0 %1429
    %1431 = vrot.lane.b32.xlu0 %v687, 127
    %v1432 = vpop.permute.xlu0 %1431
    %1433 = vrot.lane.b32.xlu0 %v689, 127
    %v1434 = vpop.permute.xlu0 %1433
    %1435 = vrot.lane.b32.xlu0 %v691, 127
    %v1436 = vpop.permute.xlu0 %1435
    %1437 = vrot.lane.b32.xlu0 %v695, 127
    %v1438 = vpop.permute.xlu0 %1437
    %1439 = vrot.lane.b32.xlu0 %v697, 127
    %v1440 = vpop.permute.xlu0 %1439
    %1441 = vrot.lane.b32.xlu0 %v699, 127
    %v1442 = vpop.permute.xlu0 %1441
    %1443 = vrot.lane.b32.xlu0 %v701, 127
    %v1444 = vpop.permute.xlu0 %1443
    %1445 = vrot.lane.b32.xlu0 %v705, 127
    %v1446 = vpop.permute.xlu0 %1445
    %1447 = vrot.lane.b32.xlu0 %v707, 127
    %v1448 = vpop.permute.xlu0 %1447
    %1449 = vrot.lane.b32.xlu0 %v709, 127
    %v1450 = vpop.permute.xlu0 %1449
    %1451 = vrot.lane.b32.xlu0 %v711, 127
    %v1452 = vpop.permute.xlu0 %1451
    %v1453 = vsel %vm1003, %v1422, %v1424
    %v1454 = vsel %vm1003, %v1426, %v1428
    %v1455 = vsel %vm1003, %v1430, %v1432
    %v1456 = vsel %vm1003, %v1434, %v1436
    %v1457 = vsel %vm1003, %v1438, %v1440
    %v1458 = vsel %vm1003, %v1442, %v1444
    %v1459 = vsel %vm1003, %v1446, %v1448
    %v1460 = vsel %vm1003, %v1450, %v1452
    %v1485 = vsel %vm1003, %v1424, %v1422
    %v1486 = vsel %vm1003, %v1428, %v1426
    %v1487 = vsel %vm1003, %v1432, %v1430
    %v1488 = vsel %vm1003, %v1436, %v1434
    %v1489 = vsel %vm1003, %v1440, %v1438
    %v1490 = vsel %vm1003, %v1444, %v1442
    %v1491 = vsel %vm1003, %v1448, %v1446
    %v1492 = vsel %vm1003, %v1452, %v1450
    %1493 = vrot.lane.b32.xlu0 %v677, 1
    %v1494 = vpop.permute.xlu0 %1493
    %1495 = vrot.lane.b32.xlu0 %v681, 1
    %v1496 = vpop.permute.xlu0 %1495
    %1497 = vrot.lane.b32.xlu0 %v687, 1
    %v1498 = vpop.permute.xlu0 %1497
    %1499 = vrot.lane.b32.xlu0 %v691, 1
    %v1500 = vpop.permute.xlu0 %1499
    %1501 = vrot.lane.b32.xlu0 %v697, 1
    %v1502 = vpop.permute.xlu0 %1501
    %1503 = vrot.lane.b32.xlu0 %v701, 1
    %v1504 = vpop.permute.xlu0 %1503
    %1505 = vrot.lane.b32.xlu0 %v707, 1
    %v1506 = vpop.permute.xlu0 %1505
    %1507 = vrot.lane.b32.xlu0 %v711, 1
    %v1508 = vpop.permute.xlu0 %1507
    %1517 = vrot.lane.b32.xlu0 %v675, 1
    %v1518 = vpop.permute.xlu0 %1517
    %1519 = vrot.lane.b32.xlu0 %v679, 1
    %v1520 = vpop.permute.xlu0 %1519
    %1521 = vrot.lane.b32.xlu0 %v685, 1
    %v1522 = vpop.permute.xlu0 %1521
    %1523 = vrot.lane.b32.xlu0 %v689, 1
    %v1524 = vpop.permute.xlu0 %1523
    %1525 = vrot.lane.b32.xlu0 %v695, 1
    %v1526 = vpop.permute.xlu0 %1525
    %1527 = vrot.lane.b32.xlu0 %v699, 1
    %v1528 = vpop.permute.xlu0 %1527
    %1529 = vrot.lane.b32.xlu0 %v705, 1
    %v1530 = vpop.permute.xlu0 %1529
    %1531 = vrot.lane.b32.xlu0 %v709, 1
    %v1532 = vpop.permute.xlu0 %1531
    %v1533 = vsel %vm1148, %v1518, %v1494
    %v1534 = vsel %vm1148, %v1520, %v1496
    %v1535 = vsel %vm1148, %v1522, %v1498
    %v1536 = vsel %vm1148, %v1524, %v1500
    %v1537 = vsel %vm1148, %v1526, %v1502
    %v1538 = vsel %vm1148, %v1528, %v1504
    %v1539 = vsel %vm1148, %v1530, %v1506
    %v1540 = vsel %vm1148, %v1532, %v1508
    %v1557 = vsel %vm1148, %v1494, %v1518
    %v1558 = vsel %vm1148, %v1496, %v1520
    %v1559 = vsel %vm1148, %v1498, %v1522
    %v1560 = vsel %vm1148, %v1500, %v1524
    %v1561 = vsel %vm1148, %v1502, %v1526
    %v1562 = vsel %vm1148, %v1504, %v1528
    %v1563 = vsel %vm1148, %v1506, %v1530
    %v1564 = vsel %vm1148, %v1508, %v1532
    %v1565 = vsel %vm903, %v1453, %v1557
    %v1566 = vsel %vm904, %v1485, %v1533
    %v1567 = vsel %vm903, %v1454, %v1558
    %v1568 = vsel %vm904, %v1486, %v1534
    %v1569 = vsel %vm903, %v1455, %v1559
    %v1570 = vsel %vm904, %v1487, %v1535
    %v1571 = vsel %vm903, %v1456, %v1560
    %v1572 = vsel %vm904, %v1488, %v1536
    %v1573 = vsel %vm903, %v1457, %v1561
    %v1574 = vsel %vm904, %v1489, %v1537
    %v1575 = vsel %vm903, %v1458, %v1562
    %v1576 = vsel %vm904, %v1490, %v1538
    %v1577 = vsel %vm903, %v1459, %v1563
    %v1578 = vsel %vm904, %v1491, %v1539
    %v1579 = vsel %vm903, %v1460, %v1564
    %v1580 = vsel %vm904, %v1492, %v1540
    %v1581 = vmul.f32 %v675, %v786
    %v1582 = vmul.f32 %v677, %v787
    %v1583 = vmul.f32 %v679, %v790
    %v1584 = vmul.f32 %v681, %v791
    %v1585 = vmul.f32 %v685, %v794
    %v1586 = vmul.f32 %v687, %v795
    %v1587 = vmul.f32 %v689, %v798
    %v1588 = vmul.f32 %v691, %v799
    %v1589 = vmul.f32 %v695, %v802
    %v1590 = vmul.f32 %v697, %v803
    %v1591 = vmul.f32 %v699, %v806
    %v1592 = vmul.f32 %v701, %v807
    %v1593 = vmul.f32 %v705, %v810
    %v1594 = vmul.f32 %v707, %v811
    %v1595 = vmul.f32 %v709, %v814
    %v1596 = vmul.f32 %v711, %v815
    %v1597 = vmul.f32 %v1565, %v818
    %v1598 = vmul.f32 %v1566, %v819
    %v1599 = vmul.f32 %v1567, %v822
    %v1600 = vmul.f32 %v1568, %v823
    %v1601 = vmul.f32 %v1569, %v826
    %v1602 = vmul.f32 %v1570, %v827
    %v1603 = vmul.f32 %v1571, %v830
    %v1604 = vmul.f32 %v1572, %v831
    %v1605 = vmul.f32 %v1573, %v834
    %v1606 = vmul.f32 %v1574, %v835
    %v1607 = vmul.f32 %v1575, %v838
    %v1608 = vmul.f32 %v1576, %v839
    %v1609 = vmul.f32 %v1577, %v842
    %v1610 = vmul.f32 %v1578, %v843
    %v1611 = vmul.f32 %v1579, %v846
    %v1612 = vmul.f32 %v1580, %v847
    %v1613 = vadd.f32 %v1581, %v1597
    %v1614 = vadd.f32 %v1582, %v1598
    %v1615 = vadd.f32 %v1583, %v1599
    %v1616 = vadd.f32 %v1584, %v1600
    %v1617 = vadd.f32 %v1585, %v1601
    %v1618 = vadd.f32 %v1586, %v1602
    %v1619 = vadd.f32 %v1587, %v1603
    %v1620 = vadd.f32 %v1588, %v1604
    %v1621 = vadd.f32 %v1589, %v1605
    %v1622 = vadd.f32 %v1590, %v1606
    %v1623 = vadd.f32 %v1591, %v1607
    %v1624 = vadd.f32 %v1592, %v1608
    %v1625 = vadd.f32 %v1593, %v1609
    %v1626 = vadd.f32 %v1594, %v1610
    %v1627 = vadd.f32 %v1595, %v1611
    %v1628 = vadd.f32 %v1596, %v1612
    %1629 = vst [vmem:[#allocation11] sm:$0xff] %v1613
    %1630 = vst [vmem:[#allocation11 + $0x8] sm:$0xff] %v1614
    %1631 = vst [vmem:[#allocation11 + $0x10] sm:$0xff] %v1615
    %1632 = vst [vmem:[#allocation11 + $0x18] sm:$0xff] %v1616
    %1633 = vst [vmem:[#allocation11 + $0x20] sm:$0xff] %v1617
    %1634 = vst [vmem:[#allocation11 + $0x28] sm:$0xff] %v1618
    %1635 = vst [vmem:[#allocation11 + $0x30] sm:$0xff] %v1619
    %1636 = vst [vmem:[#allocation11 + $0x38] sm:$0xff] %v1620
    %1637 = vst [vmem:[#allocation11 + $0x40] sm:$0xff] %v1621
    %1638 = vst [vmem:[#allocation11 + $0x48] sm:$0xff] %v1622
    %1639 = vst [vmem:[#allocation11 + $0x50] sm:$0xff] %v1623
    %1640 = vst [vmem:[#allocation11 + $0x58] sm:$0xff] %v1624
    %1641 = vst [vmem:[#allocation11 + $0x60] sm:$0xff] %v1625
    %1642 = vst [vmem:[#allocation11 + $0x68] sm:$0xff] %v1626
    %1643 = vst [vmem:[#allocation11 + $0x70] sm:$0xff] %v1627
    %1644 = vst [vmem:[#allocation11 + $0x78] sm:$0xff] %v1628
    %1645 = vst [vmem:[#allocation13] sm:$0xff] %v748
    %1646 = vst [vmem:[#allocation13 + $0x8] sm:$0xff] %v750
    %1647 = vst [vmem:[#allocation13 + $0x10] sm:$0xff] %v752
    %1648 = vst [vmem:[#allocation13 + $0x18] sm:$0xff] %v754
    %1649 = vst [vmem:[#allocation13 + $0x20] sm:$0xff] %v758
    %1650 = vst [vmem:[#allocation13 + $0x28] sm:$0xff] %v760
    %1651 = vst [vmem:[#allocation13 + $0x30] sm:$0xff] %v762
    %1652 = vst [vmem:[#allocation13 + $0x38] sm:$0xff] %v764
    %1653 = vst [vmem:[#allocation13 + $0x40] sm:$0xff] %v768
    %1654 = vst [vmem:[#allocation13 + $0x48] sm:$0xff] %v770
    %1655 = vst [vmem:[#allocation13 + $0x50] sm:$0xff] %v772
    %1656 = vst [vmem:[#allocation13 + $0x58] sm:$0xff] %v774
    %1657 = vst [vmem:[#allocation13 + $0x60] sm:$0xff] %v778
    %1658 = vst [vmem:[#allocation13 + $0x68] sm:$0xff] %v780
    %1659 = vst [vmem:[#allocation13 + $0x70] sm:$0xff] %v782
    %1660 = vst [vmem:[#allocation13 + $0x78] sm:$0xff] %v784
    // Predicated region
    $region34: #{tpu_custom_call.1} parent=1 // pred_check
      _
    $region35: #{tpu_custom_call.1} parent=1 // pred_check_branch
      %1662 = sbr.rel (0) target = $region37
    $region36: #{tpu_custom_call.1} parent=1 // pred_region
      %s1664 = ssub.s32 4096, 4096
      %1665 = vsyncadd [#allocation4], %s1664
      %s1666 = sshll.u32 [#allocation10], 4
      %s1667 = int_to_ptr.vmem [resolvable:$true] %s1666
      %1672 = dma.vmem_to_hbm [thread:$0]  %s1667, 4096, %s4, [#allocation4], 512, 512, 32
    $region37: #{tpu_custom_call.1} parent=1 // pred_fallthru
      _
    // Predicated region
    $region38: #{tpu_custom_call.1} parent=1 // pred_check
      _
    $region39: #{tpu_custom_call.1} parent=1 // pred_check_branch
      %1674 = sbr.rel (0) target = $region41
    $region40: #{tpu_custom_call.1} parent=1 // pred_region
      %s1676 = ssub.s32 2048, 2048
      %1677 = vsyncadd [#allocation12], %s1676
      %s1678 = sshll.u32 [#allocation11], 4
      %s1679 = int_to_ptr.vmem [resolvable:$true] %s1678
      %1684 = dma.vmem_to_hbm [thread:$0]  %s1679, 2048, %s5, [#allocation12], 256, 256, 16
    $region41: #{tpu_custom_call.1} parent=1 // pred_fallthru
      _
    // Predicated region
    $region42: #{tpu_custom_call.1} parent=1 // pred_check
      _
    $region43: #{tpu_custom_call.1} parent=1 // pred_check_branch
      %1686 = sbr.rel (0) target = $region45
    $region44: #{tpu_custom_call.1} parent=1 // pred_region
      %s1688 = ssub.s32 2048, 2048
      %1689 = vsyncadd [#allocation12], %s1688
      %s1690 = sshll.u32 [#allocation13], 4
      %s1691 = int_to_ptr.vmem [resolvable:$true] %s1690
      %1696 = dma.vmem_to_hbm [thread:$0]  %s1691, 2048, %s6, [#allocation12], 256, 256, 16
    $region45: #{tpu_custom_call.1} parent=1 // pred_fallthru
      _
    // Predicated region
    $region46: #{tpu_custom_call.1} parent=1 // pred_check
      _
    $region47: #{tpu_custom_call.1} parent=1 // pred_check_branch
      %1698 = sbr.rel (0) target = $region49
    $region48: #{tpu_custom_call.1} parent=1 // pred_region
      %1699 = dma.done [#allocation4], 4096
    $region49: #{tpu_custom_call.1} parent=1 // pred_fallthru
      _
    // Predicated region
    $region50: #{tpu_custom_call.1} parent=1 // pred_check
      _
    $region51: #{tpu_custom_call.1} parent=1 // pred_check_branch
      %1701 = sbr.rel (0) target = $region53
    $region52: #{tpu_custom_call.1} parent=1 // pred_region
      %1702 = dma.done [#allocation12], 2048
    $region53: #{tpu_custom_call.1} parent=1 // pred_fallthru
      _
    // Predicated region
    $region54: #{tpu_custom_call.1} parent=1 // pred_check
      _
    $region55: #{tpu_custom_call.1} parent=1 // pred_check_branch
      %1704 = sbr.rel (0) target = $region57
    $region56: #{tpu_custom_call.1} parent=1 // pred_region
      %1705 = dma.done [#allocation12], 2048
    $region57: #{tpu_custom_call.1} parent=1 // pred_fallthru
      _
    %1706 = vsyncpa [#allocation3], 1
    %1707 = vsyncpa [#allocation6], 1
    %1708 = vsyncpa [#allocation9], 1
    %1709 = vsyncpa [#allocation4], 1
    %1710 = vsyncpa [#allocation12], 1

</llo_original>
